<compile_context>
chip_gen: v7x
topology: tpu7x:2x2x1
jax: 0.10.0
libtpu: 0.0.40
codegen_flags: <defaults>
</compile_context>

<pallas_src>
import functools

import jax
import jax.numpy as jnp
from jax.experimental import pallas as pl
from jax.experimental.pallas import tpu as pltpu

HIDDEN_SIZES = [512, 256, 128, 64, 32]

# Static lane offsets of each bias segment inside the packed (1, 993) buffer:
#   b1[0:512] | b2[512:768] | b3[768:896] | b4[896:960] | b5[960:992] | b6[992:993]
_BIAS_OFFSETS = []
_off = 0
for _h in HIDDEN_SIZES:
    _BIAS_OFFSETS.append((_off, _off + _h))
    _off += _h
_B6_LO, _B6_HI = _off, _off + 1
_PACKED_LEN = _off + 1


def _dropout_pair_kernel(
    t_i,                              # static Python int: rows of traj_i in this pair
    x_ref,                            # (t_i + t_j, D) f32  one pair's stacked rows
    w1_ref, w2_ref, w3_ref, w4_ref, w5_ref,   # bf16 weights, VMEM-resident (const index_map)
    bias_ref,                         # (1, 993) f32 packed biases b1..b5, b6
    w6m_ref,                          # (1, 1, 32) f32 per-pair fc6 row with mask folded in
    out_ref,                          # (1, 1, 2) f32: [sum r_i, sum r_j] for this pair
):
    def dense_relu(h, w_ref, seg):
        lo, hi = seg
        # Native bf16 x bf16 -> f32 MXU path (no f32 weight upcast); epilogue stays f32.
        y = jnp.dot(h.astype(jnp.bfloat16), w_ref[...],
                    preferred_element_type=jnp.float32)
        return jnp.maximum(y + bias_ref[:, lo:hi], 0.0)

    h = dense_relu(x_ref[...], w1_ref, _BIAS_OFFSETS[0])     # (N, 512)
    h = dense_relu(h, w2_ref, _BIAS_OFFSETS[1])               # (N, 256)
    h = dense_relu(h, w3_ref, _BIAS_OFFSETS[2])               # (N, 128)
    h = dense_relu(h, w4_ref, _BIAS_OFFSETS[3])               # (N, 64)
    h = dense_relu(h, w5_ref, _BIAS_OFFSETS[4])               # (N, 32)

    # fc6: dropout mask is pre-folded into the (1, 32) row -> VPU multiply + lane
    # reduce (avoids a degenerate N=1 MXU matmul and its lane-sparse store).
    r = jnp.sum(h * w6m_ref[0], axis=-1, keepdims=True)
    r = jnp.maximum(r + bias_ref[:, _B6_LO:_B6_HI], 0.0)      # (N, 1); r >= 0 => |r| == r

    # Static-slice per-trajectory sums (t_i is a static int; split is sublane-aligned
    # when t_i is a multiple of 8).
    s_i = jnp.sum(r[:t_i, :], axis=0, keepdims=True)          # (1, 1)
    s_j = jnp.sum(r[t_i:, :], axis=0, keepdims=True)          # (1, 1)
    out_ref[...] = jnp.concatenate([s_i, s_j], axis=1).reshape(1, 1, 2)


def _pack_biases(params):
    return jnp.concatenate(
        [params["b1"], params["b2"], params["b3"], params["b4"], params["b5"],
         params["b6"].reshape(1, 1)],
        axis=1,
    ).astype(jnp.float32)                                      # (1, 993)


@jax.jit
def dropout_net_forward_batched(params, trajs_i, trajs_j, masks):
    """B independent DropoutNet.forward calls fused into one pallas_call.

    trajs_i: (B, T_i, D), trajs_j: (B, T_j, D), masks: (B, 32) (one mask per pair,
    shared between that pair's traj_i and traj_j, exactly as forward() does).
    Returns (logits (B, 2), abs_returns (B,)).
    """
    d = params["w1"].shape[0]
    b = trajs_i.shape[0]
    x_i = trajs_i.reshape(b, -1, d).astype(jnp.float32)
    x_j = trajs_j.reshape(b, -1, d).astype(jnp.float32)
    t_i, t_j = x_i.shape[1], x_j.shape[1]
    rows = t_i + t_j
    # (8,128) rule: the per-pair row block must be sublane-tileable unless B == 1.
    # TODO(synk): pad + mask padded rows in the epilogue to support ragged lengths.
    assert rows % 8 == 0 or b == 1, "per-pair row count must be a multiple of 8 when B > 1"

    x = jnp.concatenate([x_i, x_j], axis=1).reshape(b * rows, d)   # pair-blocked rows
    bias_packed = _pack_biases(params)
    # Fold each pair's dropout mask into its fc6 row (exact: both are elementwise
    # factors ahead of the lane reduction).
    w6m = (params["w6"].reshape(1, -1).astype(jnp.float32)
           * masks.reshape(b, -1).astype(jnp.float32)).reshape(b, 1, -1)

    flops = 2 * b * rows * sum(
        int(params[f"w{k}"].shape[0]) * int(params[f"w{k}"].shape[1]) for k in range(1, 7))
    bytes_accessed = (x.size * 4
                      + sum(int(params[f"w{k}"].size) * 2 for k in range(1, 6))
                      + bias_packed.size * 4 + w6m.size * 4 + b * 2 * 4)

    def wspec(shape):
        return pl.BlockSpec(shape, lambda i: (0, 0))            # VMEM-resident across grid

    # TODO(synk): for very long trajectories add an inner row-tile grid axis so the
    # (rows, 512) peak activation stays within v7x's 64 MiB VMEM (vs 128 MiB on
    # v5e/v6e); for the strictly-serial one-pair-per-step case, hide the weight DMA
    # with a cross-call prefetch (SEMAPHORE/VMEM outputs) instead of batching.
    sums = pl.pallas_call(
        functools.partial(_dropout_pair_kernel, t_i),
        out_shape=jax.ShapeDtypeStruct((b, 1, 2), jnp.float32),
        grid=(b,),
        in_specs=[
            pl.BlockSpec((rows, d), lambda i: (i, 0)),          # this pair's rows
            wspec(params["w1"].shape),
            wspec(params["w2"].shape),
            wspec(params["w3"].shape),
            wspec(params["w4"].shape),
            wspec(params["w5"].shape),
            wspec(bias_packed.shape),
            pl.BlockSpec((1, 1, w6m.shape[-1]), lambda i: (i, 0, 0)),
        ],
        out_specs=pl.BlockSpec((1, 1, 2), lambda i: (i, 0, 0)),
        compiler_params=pltpu.CompilerParams(
            dimension_semantics=("parallel",)),                 # v7x: shard pairs over 2 TCs
        cost_estimate=pl.CostEstimate(
            flops=flops, transcendentals=0, bytes_accessed=bytes_accessed),
    )(x, params["w1"], params["w2"], params["w3"], params["w4"], params["w5"],
      bias_packed, w6m)

    logits = sums.reshape(b, 2)                                 # [cum_r_i, cum_r_j] per pair
    abs_returns = logits[:, 0] + logits[:, 1]                   # relu => sum(|r|) == sum(r)
    return logits, abs_returns


def dropout_net_forward(params, traj_i, traj_j, mask):
    """DropoutNet.forward for a single pair (mask drawn once, shared by i and j)."""
    d = params["w1"].shape[0]
    logits, abs_r = dropout_net_forward_batched(
        params, traj_i.reshape(1, -1, d), traj_j.reshape(1, -1, d), mask.reshape(1, -1))
    return logits[0], abs_r[0]


def init_params(key, input_dim):
    """nn.Linear-style init (uniform +-1/sqrt(fan_in)); fc1..fc5 weights stored bf16."""
    sizes = [input_dim] + HIDDEN_SIZES + [1]
    params = {}
    for idx in range(6):
        fan_in, fan_out = sizes[idx], sizes[idx + 1]
        key, kw, kb = jax.random.split(key, 3)
        bound = 1.0 / (fan_in ** 0.5)
        w = jax.random.uniform(kw, (fan_in, fan_out), jnp.float32, -bound, bound)
        b = jax.random.uniform(kb, (1, fan_out), jnp.float32, -bound, bound)
        # bf16 storage halves the dominant weight DMA; fc6 row is tiny -> keep f32.
        params[f"w{idx + 1}"] = w.astype(jnp.bfloat16) if idx < 5 else w
        params[f"b{idx + 1}"] = b
    return params


def _reference_forward(params, traj_i, traj_j, mask):
    """Pure-JAX reference with the kernel's numerics (bf16 matmul inputs, f32 accum)."""
    d = params["w1"].shape[0]

    def cum(traj):
        h = traj.reshape(-1, d).astype(jnp.float32)
        for k in range(1, 6):
            y = jnp.dot(h.astype(jnp.bfloat16),
                        params[f"w{k}"].astype(jnp.bfloat16),
                        preferred_element_type=jnp.float32) + params[f"b{k}"]
            h = jnp.maximum(y, 0.0)
        h = h * mask.reshape(1, -1)
        r = jnp.maximum(h @ params["w6"].astype(jnp.float32) + params["b6"], 0.0)
        return jnp.sum(r), jnp.sum(jnp.abs(r))

    ci, ai = cum(traj_i)
    cj, aj = cum(traj_j)
    return jnp.stack([ci, cj]), ai + aj


if __name__ == "__main__":
    input_dim = 64   # feature dimension of each trajectory step
    T = 8            # trajectory length (number of steps)
    B = 4            # number of (traj_i, traj_j) pairs batched through one pallas_call

    key = jax.random.PRNGKey(0)
    k_params, k_i, k_j, k_mask = jax.random.split(key, 4)

    params = init_params(k_params, input_dim)
    trajs_i = jax.random.normal(k_i, (B, T, input_dim), jnp.float32)
    trajs_j = jax.random.normal(k_j, (B, T, input_dim), jnp.float32)
    # One dropout mask per forward call (pair): (rand(32) < 0.5).float() / 0.5,
    # drawn in cum_return(traj_i) and reused for traj_j, as DropoutNet.forward does.
    masks = (jax.random.uniform(k_mask, (B, HIDDEN_SIZES[4])) < 0.5).astype(jnp.float32) / 0.5

    logits, abs_returns = dropout_net_forward_batched(params, trajs_i, trajs_j, masks)
    jax.block_until_ready((logits, abs_returns))

    # Single-pair API (the literal DropoutNet.forward signature).
    logits0, abs0 = dropout_net_forward(params, trajs_i[0], trajs_j[0], masks[0])
    jax.block_until_ready((logits0, abs0))

    assert logits.shape == (B, 2) and abs_returns.shape == (B,)
    ok = True
    for b in range(B):
        ref_logits, ref_abs = _reference_forward(params, trajs_i[b], trajs_j[b], masks[b])
        ok &= bool(jnp.allclose(logits[b], ref_logits, rtol=1e-3, atol=1e-3))
        ok &= bool(jnp.allclose(abs_returns[b], ref_abs, rtol=1e-3, atol=1e-3))
    ok &= bool(jnp.allclose(logits0, logits[0], rtol=1e-5, atol=1e-5))
    ok &= bool(jnp.allclose(abs0, abs_returns[0], rtol=1e-5, atol=1e-5))
    assert ok
    print("KERNEL_OK")
</pallas_src>

<mosaic_0001>
module attributes {stable_mosaic.version = 11 : i64} {
  func.func @_dropout_pair_kernel(%arg0: i32, %arg1: memref<16x64xf32, #tpu.memory_space<vmem>>, %arg2: memref<64x512xbf16, #tpu.memory_space<vmem>>, %arg3: memref<512x256xbf16, #tpu.memory_space<vmem>>, %arg4: memref<256x128xbf16, #tpu.memory_space<vmem>>, %arg5: memref<128x64xbf16, #tpu.memory_space<vmem>>, %arg6: memref<64x32xbf16, #tpu.memory_space<vmem>>, %arg7: memref<1x993xf32, #tpu.memory_space<vmem>>, %arg8: memref<1x1x32xf32, #tpu.memory_space<vmem>>, %arg9: memref<1x1x2xf32, #tpu.memory_space<vmem>>) attributes {dimension_semantics = [#tpu.dimension_semantics<parallel>], iteration_bounds = array<i64: 4>, scalar_prefetch = 0 : i64, scratch_operands = 0 : i64, tpu.core_type = #tpu.core_type<tc>, window_params = [{transform_indices = @transform_0, window_bounds = array<i64: 16, 64>}, {pipeline_mode = #tpu.pipeline_mode<synchronous>, transform_indices = @transform_1, window_bounds = array<i64: 64, 512>}, {pipeline_mode = #tpu.pipeline_mode<synchronous>, transform_indices = @transform_2, window_bounds = array<i64: 512, 256>}, {pipeline_mode = #tpu.pipeline_mode<synchronous>, transform_indices = @transform_3, window_bounds = array<i64: 256, 128>}, {pipeline_mode = #tpu.pipeline_mode<synchronous>, transform_indices = @transform_4, window_bounds = array<i64: 128, 64>}, {pipeline_mode = #tpu.pipeline_mode<synchronous>, transform_indices = @transform_5, window_bounds = array<i64: 64, 32>}, {pipeline_mode = #tpu.pipeline_mode<synchronous>, transform_indices = @transform_6, window_bounds = array<i64: 1, 993>}, {transform_indices = @transform_7, window_bounds = array<i64: 1, 1, 32>}, {transform_indices = @transform_8, window_bounds = array<i64: 1, 1, 2>}]} {
    %c0 = arith.constant 0 : index
    %c0_0 = arith.constant 0 : index
    %0 = vector.load %arg1[%c0, %c0_0] : memref<16x64xf32, #tpu.memory_space<vmem>>, vector<16x64xf32>
    %1 = arith.truncf %0 : vector<16x64xf32> to vector<16x64xbf16>
    %c0_1 = arith.constant 0 : index
    %c0_2 = arith.constant 0 : index
    %2 = vector.load %arg2[%c0_1, %c0_2] : memref<64x512xbf16, #tpu.memory_space<vmem>>, vector<64x512xbf16>
    %cst = arith.constant dense<0.000000e+00> : vector<16x512xf32>
    %3 = tpu.matmul %1, %2, %cst {dimension_numbers = #tpu.dot_dimension_numbers<[1], [0], [0], [1], [0, 0, 1, 1], [], []>} : vector<16x64xbf16>, vector<64x512xbf16>, vector<16x512xf32> -> vector<16x512xf32>
    %c0_3 = arith.constant 0 : index
    %c0_4 = arith.constant 0 : index
    %4 = vector.load %arg7[%c0_3, %c0_4] : memref<1x993xf32, #tpu.memory_space<vmem>>, vector<1x512xf32>
    %5 = vector.broadcast %4 : vector<1x512xf32> to vector<16x512xf32>
    %6 = arith.addf %3, %5 : vector<16x512xf32>
    %cst_5 = arith.constant 0.000000e+00 : f32
    %7 = vector.broadcast %cst_5 : f32 to vector<16x512xf32>
    %8 = arith.maximumf %6, %7 : vector<16x512xf32>
    %9 = arith.truncf %8 : vector<16x512xf32> to vector<16x512xbf16>
    %c0_6 = arith.constant 0 : index
    %c0_7 = arith.constant 0 : index
    %10 = vector.load %arg3[%c0_6, %c0_7] : memref<512x256xbf16, #tpu.memory_space<vmem>>, vector<512x256xbf16>
    %cst_8 = arith.constant dense<0.000000e+00> : vector<16x256xf32>
    %11 = tpu.matmul %9, %10, %cst_8 {dimension_numbers = #tpu.dot_dimension_numbers<[1], [0], [0], [1], [0, 0, 1, 1], [], []>} : vector<16x512xbf16>, vector<512x256xbf16>, vector<16x256xf32> -> vector<16x256xf32>
    %c0_9 = arith.constant 0 : index
    %c512 = arith.constant 512 : index
    %12 = vector.load %arg7[%c0_9, %c512] : memref<1x993xf32, #tpu.memory_space<vmem>>, vector<1x256xf32>
    %13 = vector.broadcast %12 : vector<1x256xf32> to vector<16x256xf32>
    %14 = arith.addf %11, %13 : vector<16x256xf32>
    %cst_10 = arith.constant 0.000000e+00 : f32
    %15 = vector.broadcast %cst_10 : f32 to vector<16x256xf32>
    %16 = arith.maximumf %14, %15 : vector<16x256xf32>
    %17 = arith.truncf %16 : vector<16x256xf32> to vector<16x256xbf16>
    %c0_11 = arith.constant 0 : index
    %c0_12 = arith.constant 0 : index
    %18 = vector.load %arg4[%c0_11, %c0_12] : memref<256x128xbf16, #tpu.memory_space<vmem>>, vector<256x128xbf16>
    %cst_13 = arith.constant dense<0.000000e+00> : vector<16x128xf32>
    %19 = tpu.matmul %17, %18, %cst_13 {dimension_numbers = #tpu.dot_dimension_numbers<[1], [0], [0], [1], [0, 0, 1, 1], [], []>} : vector<16x256xbf16>, vector<256x128xbf16>, vector<16x128xf32> -> vector<16x128xf32>
    %c0_14 = arith.constant 0 : index
    %c768 = arith.constant 768 : index
    %20 = vector.load %arg7[%c0_14, %c768] : memref<1x993xf32, #tpu.memory_space<vmem>>, vector<1x128xf32>
    %21 = vector.broadcast %20 : vector<1x128xf32> to vector<16x128xf32>
    %22 = arith.addf %19, %21 : vector<16x128xf32>
    %cst_15 = arith.constant 0.000000e+00 : f32
    %23 = vector.broadcast %cst_15 : f32 to vector<16x128xf32>
    %24 = arith.maximumf %22, %23 : vector<16x128xf32>
    %25 = arith.truncf %24 : vector<16x128xf32> to vector<16x128xbf16>
    %c0_16 = arith.constant 0 : index
    %c0_17 = arith.constant 0 : index
    %26 = vector.load %arg5[%c0_16, %c0_17] : memref<128x64xbf16, #tpu.memory_space<vmem>>, vector<128x64xbf16>
    %cst_18 = arith.constant dense<0.000000e+00> : vector<16x64xf32>
    %27 = tpu.matmul %25, %26, %cst_18 {dimension_numbers = #tpu.dot_dimension_numbers<[1], [0], [0], [1], [0, 0, 1, 1], [], []>} : vector<16x128xbf16>, vector<128x64xbf16>, vector<16x64xf32> -> vector<16x64xf32>
    %c0_19 = arith.constant 0 : index
    %c896 = arith.constant 896 : index
    %28 = vector.load %arg7[%c0_19, %c896] : memref<1x993xf32, #tpu.memory_space<vmem>>, vector<1x64xf32>
    %29 = vector.broadcast %28 : vector<1x64xf32> to vector<16x64xf32>
    %30 = arith.addf %27, %29 : vector<16x64xf32>
    %cst_20 = arith.constant 0.000000e+00 : f32
    %31 = vector.broadcast %cst_20 : f32 to vector<16x64xf32>
    %32 = arith.maximumf %30, %31 : vector<16x64xf32>
    %33 = arith.truncf %32 : vector<16x64xf32> to vector<16x64xbf16>
    %c0_21 = arith.constant 0 : index
    %c0_22 = arith.constant 0 : index
    %34 = vector.load %arg6[%c0_21, %c0_22] : memref<64x32xbf16, #tpu.memory_space<vmem>>, vector<64x32xbf16>
    %cst_23 = arith.constant dense<0.000000e+00> : vector<16x32xf32>
    %35 = tpu.matmul %33, %34, %cst_23 {dimension_numbers = #tpu.dot_dimension_numbers<[1], [0], [0], [1], [0, 0, 1, 1], [], []>} : vector<16x64xbf16>, vector<64x32xbf16>, vector<16x32xf32> -> vector<16x32xf32>
    %c0_24 = arith.constant 0 : index
    %c960 = arith.constant 960 : index
    %36 = vector.load %arg7[%c0_24, %c960] : memref<1x993xf32, #tpu.memory_space<vmem>>, vector<1x32xf32>
    %37 = vector.broadcast %36 : vector<1x32xf32> to vector<16x32xf32>
    %38 = arith.addf %35, %37 : vector<16x32xf32>
    %cst_25 = arith.constant 0.000000e+00 : f32
    %39 = vector.broadcast %cst_25 : f32 to vector<16x32xf32>
    %40 = arith.maximumf %38, %39 : vector<16x32xf32>
    %c0_26 = arith.constant 0 : index
    %c0_27 = arith.constant 0 : index
    %c0_28 = arith.constant 0 : index
    %41 = vector.load %arg8[%c0_26, %c0_27, %c0_28] : memref<1x1x32xf32, #tpu.memory_space<vmem>>, vector<1x1x32xf32>
    %42 = vector.shape_cast %41 : vector<1x1x32xf32> to vector<1x32xf32>
    %43 = vector.broadcast %42 : vector<1x32xf32> to vector<16x32xf32>
    %44 = arith.mulf %40, %43 : vector<16x32xf32>
    %cst_29 = arith.constant dense<0.000000e+00> : vector<16xf32>
    %45 = vector.multi_reduction <add>, %44, %cst_29 [1] : vector<16x32xf32> to vector<16xf32>
    %46 = vector.shape_cast %45 : vector<16xf32> to vector<16x1xf32>
    %c0_30 = arith.constant 0 : index
    %c992 = arith.constant 992 : index
    %47 = vector.load %arg7[%c0_30, %c992] : memref<1x993xf32, #tpu.memory_space<vmem>>, vector<1x1xf32>
    %48 = vector.broadcast %47 : vector<1x1xf32> to vector<16x1xf32>
    %49 = arith.addf %46, %48 : vector<16x1xf32>
    %cst_31 = arith.constant 0.000000e+00 : f32
    %50 = vector.broadcast %cst_31 : f32 to vector<16x1xf32>
    %51 = arith.maximumf %49, %50 : vector<16x1xf32>
    %52 = vector.extract_strided_slice %51 {offsets = [0, 0], sizes = [8, 1], strides = [1, 1]} : vector<16x1xf32> to vector<8x1xf32>
    %cst_32 = arith.constant dense<0.000000e+00> : vector<1xf32>
    %53 = vector.multi_reduction <add>, %52, %cst_32 [0] : vector<8x1xf32> to vector<1xf32>
    %54 = vector.shape_cast %53 : vector<1xf32> to vector<1x1xf32>
    %55 = vector.extract_strided_slice %51 {offsets = [8, 0], sizes = [8, 1], strides = [1, 1]} : vector<16x1xf32> to vector<8x1xf32>
    %cst_33 = arith.constant dense<0.000000e+00> : vector<1xf32>
    %56 = vector.multi_reduction <add>, %55, %cst_33 [0] : vector<8x1xf32> to vector<1xf32>
    %57 = vector.shape_cast %56 : vector<1xf32> to vector<1x1xf32>
    %58 = tpu.concatenate %54, %57 in 1 : vector<1x1xf32>, vector<1x1xf32> -> vector<1x2xf32>
    %59 = vector.shape_cast %58 : vector<1x2xf32> to vector<1x1x2xf32>
    %c0_34 = arith.constant 0 : index
    %c0_35 = arith.constant 0 : index
    %c0_36 = arith.constant 0 : index
    %60 = vector.load %arg9[%c0_34, %c0_35, %c0_36] : memref<1x1x2xf32, #tpu.memory_space<vmem>>, vector<1x1x2xf32>
    tpu.vector_store %arg9[%c0_34, %c0_35, %c0_36], %59 {strides = array<i32>} : memref<1x1x2xf32, #tpu.memory_space<vmem>>, vector<1x1x2xf32>,
    return
  }
  func.func @transform_0(%arg0: i32) -> (i32, i32) {
    %c0_i32 = arith.constant 0 : i32
    %c0_i32_0 = arith.constant 0 : i32
    return %arg0, %c0_i32 : i32, i32
  }
  func.func @transform_1(%arg0: i32) -> (i32, i32) {
    %c0_i32 = arith.constant 0 : i32
    %c0_i32_0 = arith.constant 0 : i32
    %c0_i32_1 = arith.constant 0 : i32
    return %c0_i32, %c0_i32_0 : i32, i32
  }
  func.func @transform_2(%arg0: i32) -> (i32, i32) {
    %c0_i32 = arith.constant 0 : i32
    %c0_i32_0 = arith.constant 0 : i32
    %c0_i32_1 = arith.constant 0 : i32
    return %c0_i32, %c0_i32_0 : i32, i32
  }
  func.func @transform_3(%arg0: i32) -> (i32, i32) {
    %c0_i32 = arith.constant 0 : i32
    %c0_i32_0 = arith.constant 0 : i32
    %c0_i32_1 = arith.constant 0 : i32
    return %c0_i32, %c0_i32_0 : i32, i32
  }
  func.func @transform_4(%arg0: i32) -> (i32, i32) {
    %c0_i32 = arith.constant 0 : i32
    %c0_i32_0 = arith.constant 0 : i32
    %c0_i32_1 = arith.constant 0 : i32
    return %c0_i32, %c0_i32_0 : i32, i32
  }
  func.func @transform_5(%arg0: i32) -> (i32, i32) {
    %c0_i32 = arith.constant 0 : i32
    %c0_i32_0 = arith.constant 0 : i32
    %c0_i32_1 = arith.constant 0 : i32
    return %c0_i32, %c0_i32_0 : i32, i32
  }
  func.func @transform_6(%arg0: i32) -> (i32, i32) {
    %c0_i32 = arith.constant 0 : i32
    %c0_i32_0 = arith.constant 0 : i32
    %c0_i32_1 = arith.constant 0 : i32
    return %c0_i32, %c0_i32_0 : i32, i32
  }
  func.func @transform_7(%arg0: i32) -> (i32, i32, i32) {
    %c0_i32 = arith.constant 0 : i32
    %c0_i32_0 = arith.constant 0 : i32
    %c0_i32_1 = arith.constant 0 : i32
    return %arg0, %c0_i32, %c0_i32_0 : i32, i32, i32
  }
  func.func @transform_8(%arg0: i32) -> (i32, i32, i32) {
    %c0_i32 = arith.constant 0 : i32
    %c0_i32_0 = arith.constant 0 : i32
    %c0_i32_1 = arith.constant 0 : i32
    return %arg0, %c0_i32, %c0_i32_0 : i32, i32, i32
  }
}

</mosaic_0001>

<llo_original>
// kernel: dropout_net_forward_batched.1
$region0: #{dropout_net_forward_batched.1}
  #allocation0 [shape = 'u32[]', space=smem, size = 0x4, offset = 0x4, fixed_abs, tag = 'smem constant byte address 0x4 - core index']
  #allocation1 [shape = 'u32[144,128]{1,0:T(1,128)}', space=vmem, size = 0x12000, scoped, tag = 'internal scratch']
  %s0 = inlined_call_operand.vmem [shape: f32[64,64], index: 0, kind: input, shape index: {}]
  %s1 = inlined_call_operand.vmem [shape: bf16[64,512], index: 1, kind: input, shape index: {}]
  %s2 = inlined_call_operand.hbm [shape: bf16[512,256], index: 2, kind: input, shape index: {}]
  %s3 = inlined_call_operand.vmem [shape: bf16[256,128], index: 3, kind: input, shape index: {}]
  %s4 = inlined_call_operand.vmem [shape: bf16[128,64], index: 4, kind: input, shape index: {}]
  %s5 = inlined_call_operand.vmem [shape: bf16[64,32], index: 5, kind: input, shape index: {}]
  %s6 = inlined_call_operand.vmem [shape: f32[1,993], index: 6, kind: input, shape index: {}]
  %s7 = inlined_call_operand.vmem [shape: f32[4,1,32], index: 7, kind: input, shape index: {}]
  %s8 = inlined_call_operand.vmem [shape: f32[4,1,2], index: 8, kind: output, shape index: {}]
  %s9 = sld [smem:[#allocation0]]
  $region69: #{dropout_net_forward_batched.1} parent=0
    _
  %s11 = ssub.s32 1, %s9
  %s12 = scalar_select 0, %s11, %s9
  $region1: #{dropout_net_forward_batched.1} parent=0
    #allocation2 [shape = 'u8[262144]{0}', space=vmem, size = 0x40000, scoped, tag = 'input window, operand 2, single buffered']
    #allocation3 [shape = 's32[2]{0}', space=sflag, size = 0x8, scoped, tag = 'scoped memory for dropout_net_forward_batched.1']
    %13 = vsyncpa [#allocation3], 0
    loop: start=0, step=1, limit=6
    $region2: #{dropout_net_forward_batched.1} parent=1 // loop_pre_header
      _
    $region3: #{dropout_net_forward_batched.1} parent=1 // loop_header
      %s15 = sphi 0, %s19
      %p16 = scmp.ge.s32.totalorder %s15, 6
      %s25 = sphi 0, %s27
      %s28 = sphi 0, %s25
      %s29 = sphi 0, %s28
      %s45 = sphi 0, %s29
      %s49 = sphi 0, %s49
      %s51 = sphi 0, %s49
      %s52 = sphi 0, %s51
      %s66 = sphi 0, %s52
      %s70 = sphi 0, %s70
      %s72 = sphi 0, %s70
      %s73 = sphi 0, %s72
      %s87 = sphi 0, %s73
      %s91 = sphi 0, %s91
      %s93 = sphi 0, %s91
      %s94 = sphi 0, %s93
      %s108 = sphi 0, %s94
      %s112 = sphi 0, %s112
      %s114 = sphi 0, %s112
      %s115 = sphi 0, %s114
      %s129 = sphi 0, %s115
      %s133 = sphi 0, %s133
      %s135 = sphi 0, %s133
      %s136 = sphi 0, %s135
      %s150 = sphi 0, %s136
      %s154 = sphi 0, %s154
      %s156 = sphi 0, %s154
      %s157 = sphi 0, %s156
      %s171 = sphi 0, %s157
      %s177 = sphi 0, %s179
      %s180 = sphi 0, %s177
      %s181 = sphi 0, %s180
      %s197 = sphi 0, %s181
      %s203 = sphi 0, %s205
      %s206 = sphi 0, %s203
      %s207 = sphi 0, %s206
      %s223 = sphi 0, %s207
    $region4: #{dropout_net_forward_batched.1} parent=1 // loop_header_branch
      %18 = sbr.rel (%p16) target = $region8
    $region5: #{dropout_net_forward_batched.1} parent=1 // loop_body
      %s20 = ssub.s32 %s15, 1
      %s21 = ssub.s32 %s15, 2
      %s22 = sadd.s32 %s15, 1
      %s23 = ssub.s32 %s15, %s22
      %p24 = scmp.eq.s32.totalorder %s23, 0
      %s26 = sadd.s32 %s25, 1
      %s27 = scalar_select %p24, %s25, %s26
      %p30 = pneg %p24
      %p31 = scmp.eq.s32.totalorder %s15, 3
      %p32 = por %p30, %p31
      %p33 = scmp.ne.s32.totalorder %s25, %s28
      %p34 = scmp.eq.s32.totalorder %s15, 0
      %p35 = por %p33, %p34
      %p36 = scmp.ne.s32.totalorder %s25, %s28
      %p37 = scmp.eq.s32.totalorder %s20, 3
      %p38 = por %p36, %p37
      %p39 = scmp.ne.s32.totalorder %s28, %s29
      %p40 = scmp.eq.s32.totalorder %s20, 0
      %p41 = por %p39, %p40
      %p42 = scmp.ne.s32.totalorder %s28, %s29
      %p43 = scmp.eq.s32.totalorder %s21, 3
      %p44 = por %p42, %p43
      %p46 = scmp.ne.s32.totalorder %s29, %s45
      %p47 = scmp.eq.s32.totalorder %s21, 0
      %p48 = por %p46, %p47
      %s50 = sadd.s32 %s49, 1
      %p53 = scmp.eq.s32.totalorder %s15, 3
      %p54 = scmp.ne.s32.totalorder %s49, %s51
      %p55 = scmp.eq.s32.totalorder %s15, 0
      %p56 = por %p54, %p55
      %p57 = scmp.ne.s32.totalorder %s49, %s51
      %p58 = scmp.eq.s32.totalorder %s20, 3
      %p59 = por %p57, %p58
      %p60 = scmp.ne.s32.totalorder %s51, %s52
      %p61 = scmp.eq.s32.totalorder %s20, 0
      %p62 = por %p60, %p61
      %p63 = scmp.ne.s32.totalorder %s51, %s52
      %p64 = scmp.eq.s32.totalorder %s21, 3
      %p65 = por %p63, %p64
      %p67 = scmp.ne.s32.totalorder %s52, %s66
      %p68 = scmp.eq.s32.totalorder %s21, 0
      %p69 = por %p67, %p68
      %s71 = sadd.s32 %s70, 1
      %p74 = scmp.eq.s32.totalorder %s15, 3
      %p75 = scmp.ne.s32.totalorder %s70, %s72
      %p76 = scmp.eq.s32.totalorder %s15, 0
      %p77 = por %p75, %p76
      %p78 = scmp.ne.s32.totalorder %s70, %s72
      %p79 = scmp.eq.s32.totalorder %s20, 3
      %p80 = por %p78, %p79
      %p81 = scmp.ne.s32.totalorder %s72, %s73
      %p82 = scmp.eq.s32.totalorder %s20, 0
      %p83 = por %p81, %p82
      %p84 = scmp.ne.s32.totalorder %s72, %s73
      %p85 = scmp.eq.s32.totalorder %s21, 3
      %p86 = por %p84, %p85
      %p88 = scmp.ne.s32.totalorder %s73, %s87
      %p89 = scmp.eq.s32.totalorder %s21, 0
      %p90 = por %p88, %p89
      %s92 = sadd.s32 %s91, 1
      %p95 = scmp.eq.s32.totalorder %s15, 3
      %p96 = scmp.ne.s32.totalorder %s91, %s93
      %p97 = scmp.eq.s32.totalorder %s15, 0
      %p98 = por %p96, %p97
      %p99 = scmp.ne.s32.totalorder %s91, %s93
      %p100 = scmp.eq.s32.totalorder %s20, 3
      %p101 = por %p99, %p100
      %p102 = scmp.ne.s32.totalorder %s93, %s94
      %p103 = scmp.eq.s32.totalorder %s20, 0
      %p104 = por %p102, %p103
      %p105 = scmp.ne.s32.totalorder %s93, %s94
      %p106 = scmp.eq.s32.totalorder %s21, 3
      %p107 = por %p105, %p106
      %p109 = scmp.ne.s32.totalorder %s94, %s108
      %p110 = scmp.eq.s32.totalorder %s21, 0
      %p111 = por %p109, %p110
      %s113 = sadd.s32 %s112, 1
      %p116 = scmp.eq.s32.totalorder %s15, 3
      %p117 = scmp.ne.s32.totalorder %s112, %s114
      %p118 = scmp.eq.s32.totalorder %s15, 0
      %p119 = por %p117, %p118
      %p120 = scmp.ne.s32.totalorder %s112, %s114
      %p121 = scmp.eq.s32.totalorder %s20, 3
      %p122 = por %p120, %p121
      %p123 = scmp.ne.s32.totalorder %s114, %s115
      %p124 = scmp.eq.s32.totalorder %s20, 0
      %p125 = por %p123, %p124
      %p126 = scmp.ne.s32.totalorder %s114, %s115
      %p127 = scmp.eq.s32.totalorder %s21, 3
      %p128 = por %p126, %p127
      %p130 = scmp.ne.s32.totalorder %s115, %s129
      %p131 = scmp.eq.s32.totalorder %s21, 0
      %p132 = por %p130, %p131
      %s134 = sadd.s32 %s133, 1
      %p137 = scmp.eq.s32.totalorder %s15, 3
      %p138 = scmp.ne.s32.totalorder %s133, %s135
      %p139 = scmp.eq.s32.totalorder %s15, 0
      %p140 = por %p138, %p139
      %p141 = scmp.ne.s32.totalorder %s133, %s135
      %p142 = scmp.eq.s32.totalorder %s20, 3
      %p143 = por %p141, %p142
      %p144 = scmp.ne.s32.totalorder %s135, %s136
      %p145 = scmp.eq.s32.totalorder %s20, 0
      %p146 = por %p144, %p145
      %p147 = scmp.ne.s32.totalorder %s135, %s136
      %p148 = scmp.eq.s32.totalorder %s21, 3
      %p149 = por %p147, %p148
      %p151 = scmp.ne.s32.totalorder %s136, %s150
      %p152 = scmp.eq.s32.totalorder %s21, 0
      %p153 = por %p151, %p152
      %s155 = sadd.s32 %s154, 1
      %p158 = scmp.eq.s32.totalorder %s15, 3
      %p159 = scmp.ne.s32.totalorder %s154, %s156
      %p160 = scmp.eq.s32.totalorder %s15, 0
      %p161 = por %p159, %p160
      %p162 = scmp.ne.s32.totalorder %s154, %s156
      %p163 = scmp.eq.s32.totalorder %s20, 3
      %p164 = por %p162, %p163
      %p165 = scmp.ne.s32.totalorder %s156, %s157
      %p166 = scmp.eq.s32.totalorder %s20, 0
      %p167 = por %p165, %p166
      %p168 = scmp.ne.s32.totalorder %s156, %s157
      %p169 = scmp.eq.s32.totalorder %s21, 3
      %p170 = por %p168, %p169
      %p172 = scmp.ne.s32.totalorder %s157, %s171
      %p173 = scmp.eq.s32.totalorder %s21, 0
      %p174 = por %p172, %p173
      %s175 = ssub.s32 %s15, %s22
      %p176 = scmp.eq.s32.totalorder %s175, 0
      %s178 = sadd.s32 %s177, 1
      %s179 = scalar_select %p176, %s177, %s178
      %p182 = pneg %p176
      %p183 = scmp.eq.s32.totalorder %s15, 3
      %p184 = por %p182, %p183
      %p185 = scmp.ne.s32.totalorder %s177, %s180
      %p186 = scmp.eq.s32.totalorder %s15, 0
      %p187 = por %p185, %p186
      %p188 = scmp.ne.s32.totalorder %s177, %s180
      %p189 = scmp.eq.s32.totalorder %s20, 3
      %p190 = por %p188, %p189
      %p191 = scmp.ne.s32.totalorder %s180, %s181
      %p192 = scmp.eq.s32.totalorder %s20, 0
      %p193 = por %p191, %p192
      %p194 = scmp.ne.s32.totalorder %s180, %s181
      %p195 = scmp.eq.s32.totalorder %s21, 3
      %p196 = por %p194, %p195
      %p198 = scmp.ne.s32.totalorder %s181, %s197
      %p199 = scmp.eq.s32.totalorder %s21, 0
      %p200 = por %p198, %p199
      %s201 = ssub.s32 %s15, %s22
      %p202 = scmp.eq.s32.totalorder %s201, 0
      %s204 = sadd.s32 %s203, 1
      %s205 = scalar_select %p202, %s203, %s204
      %p208 = pneg %p202
      %p209 = scmp.eq.s32.totalorder %s15, 3
      %p210 = por %p208, %p209
      %p211 = scmp.ne.s32.totalorder %s203, %s206
      %p212 = scmp.eq.s32.totalorder %s15, 0
      %p213 = por %p211, %p212
      %p214 = scmp.ne.s32.totalorder %s203, %s206
      %p215 = scmp.eq.s32.totalorder %s20, 3
      %p216 = por %p214, %p215
      %p217 = scmp.ne.s32.totalorder %s206, %s207
      %p218 = scmp.eq.s32.totalorder %s20, 0
      %p219 = por %p217, %p218
      %p220 = scmp.ne.s32.totalorder %s206, %s207
      %p221 = scmp.eq.s32.totalorder %s21, 3
      %p222 = por %p220, %p221
      %p224 = scmp.ne.s32.totalorder %s207, %s223
      %p225 = scmp.eq.s32.totalorder %s21, 0
      %p226 = por %p224, %p225
      %p227 = scmp.le.s32.totalorder 1, %s15
      %p228 = scmp.lt.s32.totalorder %s15, 5
      %p229 = pnand %p227, %p228
      %p230 = pneg %p229
      // Predicated region
      $region9: #{dropout_net_forward_batched.1} parent=5 // pred_check
        _
      $region10: #{dropout_net_forward_batched.1} parent=5 // pred_check_branch
        %232 = sbr.rel (%p229) target = $region12
      $region11: #{dropout_net_forward_batched.1} parent=5 // pred_region
        %s233 = ssub.s32 %s15, 1
        // Predicated region
        $region13: #{dropout_net_forward_batched.1} parent=11 // pred_check
          %p234 = pneg %p62
        $region14: #{dropout_net_forward_batched.1} parent=11 // pred_check_branch
          %236 = sbr.rel (%p234) target = $region16
        $region15: #{dropout_net_forward_batched.1} parent=11 // pred_region
          _
        $region16: #{dropout_net_forward_batched.1} parent=11 // pred_fallthru
          _
        // Predicated region
        $region17: #{dropout_net_forward_batched.1} parent=11 // pred_check
          %p237 = pneg %p83
        $region18: #{dropout_net_forward_batched.1} parent=11 // pred_check_branch
          %239 = sbr.rel (%p237) target = $region20
        $region19: #{dropout_net_forward_batched.1} parent=11 // pred_region
          %s241 = ssub.s32 8192, 8192
          %242 = vsyncadd [#allocation3], %s241
          %s243 = sshll.u32 [#allocation2], 4
          %s244 = int_to_ptr.vmem [resolvable:$true] %s243
          %249 = dma.hbm_to_vmem [thread:$0]  %s2, 8192, %s244, [#allocation3], 128, 128, 8
        $region20: #{dropout_net_forward_batched.1} parent=11 // pred_fallthru
          _
        // Predicated region
        $region21: #{dropout_net_forward_batched.1} parent=11 // pred_check
          %p250 = pneg %p104
        $region22: #{dropout_net_forward_batched.1} parent=11 // pred_check_branch
          %252 = sbr.rel (%p250) target = $region24
        $region23: #{dropout_net_forward_batched.1} parent=11 // pred_region
          _
        $region24: #{dropout_net_forward_batched.1} parent=11 // pred_fallthru
          _
        // Predicated region
        $region25: #{dropout_net_forward_batched.1} parent=11 // pred_check
          %p253 = pneg %p125
        $region26: #{dropout_net_forward_batched.1} parent=11 // pred_check_branch
          %255 = sbr.rel (%p253) target = $region28
        $region27: #{dropout_net_forward_batched.1} parent=11 // pred_region
          _
        $region28: #{dropout_net_forward_batched.1} parent=11 // pred_fallthru
          _
        // Predicated region
        $region29: #{dropout_net_forward_batched.1} parent=11 // pred_check
          %p256 = pneg %p146
        $region30: #{dropout_net_forward_batched.1} parent=11 // pred_check_branch
          %258 = sbr.rel (%p256) target = $region32
        $region31: #{dropout_net_forward_batched.1} parent=11 // pred_region
          _
        $region32: #{dropout_net_forward_batched.1} parent=11 // pred_fallthru
          _
        // Predicated region
        $region33: #{dropout_net_forward_batched.1} parent=11 // pred_check
          %p259 = pneg %p167
        $region34: #{dropout_net_forward_batched.1} parent=11 // pred_check_branch
          %261 = sbr.rel (%p259) target = $region36
        $region35: #{dropout_net_forward_batched.1} parent=11 // pred_region
          _
        $region36: #{dropout_net_forward_batched.1} parent=11 // pred_fallthru
          _
      $region12: #{dropout_net_forward_batched.1} parent=5 // pred_fallthru
        _
      %p262 = scmp.lt.s32.totalorder %s15, 4
      // Predicated region
      $region37: #{dropout_net_forward_batched.1} parent=5 // pred_check
        %p263 = pneg %p262
      $region38: #{dropout_net_forward_batched.1} parent=5 // pred_check_branch
        %265 = sbr.rel (%p263) target = $region40
      $region39: #{dropout_net_forward_batched.1} parent=5 // pred_region
        // Predicated region
        $region41: #{dropout_net_forward_batched.1} parent=39 // pred_check
          %p266 = pneg %p35
        $region42: #{dropout_net_forward_batched.1} parent=39 // pred_check_branch
          %268 = sbr.rel (%p266) target = $region44
        $region43: #{dropout_net_forward_batched.1} parent=39 // pred_region
          %s269 = smul.u32 2, %s15
          %p270 = scmp.lt.s32.totalorder %s269, 7
          %s271 = scalar_select %p270, %s269, 7
          %s272 = smul.addr %s271, 8
          %s273 = scalar_lea.vmem %s0, %s272
          %s274 = smul.u32 2, %s15
        $region44: #{dropout_net_forward_batched.1} parent=39 // pred_fallthru
          _
        // Predicated region
        $region45: #{dropout_net_forward_batched.1} parent=39 // pred_check
          %p275 = pneg %p187
        $region46: #{dropout_net_forward_batched.1} parent=39 // pred_check_branch
          %277 = sbr.rel (%p275) target = $region48
        $region47: #{dropout_net_forward_batched.1} parent=39 // pred_region
          %p278 = scmp.lt.s32.totalorder %s15, 3
          %s279 = scalar_select %p278, %s15, 3
          %s280 = scalar_lea.vmem %s7, %s279
        $region48: #{dropout_net_forward_batched.1} parent=39 // pred_fallthru
          _
      $region40: #{dropout_net_forward_batched.1} parent=5 // pred_fallthru
        _
      %p281 = scmp.le.s32.totalorder 1, %s15
      %p282 = scmp.lt.s32.totalorder %s15, 5
      %p283 = pnand %p281, %p282
      %p284 = pneg %p283
      // Predicated region
      $region49: #{dropout_net_forward_batched.1} parent=5 // pred_check
        _
      $region50: #{dropout_net_forward_batched.1} parent=5 // pred_check_branch
        %286 = sbr.rel (%p283) target = $region52
      $region51: #{dropout_net_forward_batched.1} parent=5 // pred_region
        %s287 = ssub.s32 %s15, 1
        // Predicated region
        $region53: #{dropout_net_forward_batched.1} parent=51 // pred_check
          %p288 = pneg %p83
        $region54: #{dropout_net_forward_batched.1} parent=51 // pred_check_branch
          %290 = sbr.rel (%p288) target = $region56
        $region55: #{dropout_net_forward_batched.1} parent=51 // pred_region
          %291 = dma.done [#allocation3], 8192
        $region56: #{dropout_net_forward_batched.1} parent=51 // pred_fallthru
          _
        %s292 = smul.u32 2, %s20
        %p293 = scmp.lt.s32.totalorder %s292, 7
        %s294 = scalar_select %p293, %s292, 7
        %s295 = smul.addr %s294, 8
        %s296 = scalar_lea.vmem %s0, %s295
        %p297 = pneg %p41
        %p298 = pneg %p38
        %p299 = pneg %p62
        %p300 = pneg %p59
        %p301 = pneg %p83
        %p302 = pneg %p80
        %p303 = pneg %p104
        %p304 = pneg %p101
        %p305 = pneg %p125
        %p306 = pneg %p122
        %p307 = pneg %p146
        %p308 = pneg %p143
        %p309 = pneg %p167
        %p310 = pneg %p164
        %p311 = scmp.lt.s32.totalorder %s20, 3
        %s312 = scalar_select %p311, %s20, 3
        %s313 = scalar_lea.vmem %s7, %s312
        %p314 = pneg %p193
        %p315 = pneg %p190
        %p316 = pneg %p219
        %p317 = pneg %p216
        %p318 = scmp.lt.s32.totalorder %s20, 3
        %s319 = scalar_select %p318, %s20, 3
        %s320 = scalar_lea.vmem %s8, %s319
        %s321 = smul.u32 2, %s20
        %p322 = scmp.lt.s32.totalorder %s321, 7
        %s323 = scalar_select %p322, %s321, 7
        %s324 = smul.addr %s323, 8
        %s325 = scalar_lea.vmem %s0, %s324
        %s326 = smul.u32 2, %s20
        %p327 = scmp.lt.s32.totalorder %s20, 3
        %s328 = scalar_select %p327, %s20, 3
        %s329 = scalar_lea.vmem %s7, %s328
        %p330 = scmp.lt.s32.totalorder %s20, 3
        %s331 = scalar_select %p330, %s20, 3
        %s332 = scalar_lea.vmem %s8, %s331
        %v334 = vld [vmem:[%s325] sm:$0xff]
        %v335 = vld [vmem:[%s325 + $0x8] sm:$0xff]
        %v336 = vpack.c.bf16 %v335, %v334
        %v337 = vld [vmem:[%s1] sm:$0xff]
        %v338 = vld [vmem:[%s1 + $0x8] sm:$0xff]
        %v339 = vld [vmem:[%s1 + $0x10] sm:$0xff]
        %v340 = vld [vmem:[%s1 + $0x18] sm:$0xff]
        %v341 = vld [vmem:[%s1 + $0x20] sm:$0xff]
        %v342 = vld [vmem:[%s1 + $0x28] sm:$0xff]
        %v343 = vld [vmem:[%s1 + $0x30] sm:$0xff]
        %v344 = vld [vmem:[%s1 + $0x38] sm:$0xff]
        %v345 = vld [vmem:[%s1 + $0x40] sm:$0xff]
        %v346 = vld [vmem:[%s1 + $0x48] sm:$0xff]
        %v347 = vld [vmem:[%s1 + $0x50] sm:$0xff]
        %v348 = vld [vmem:[%s1 + $0x58] sm:$0xff]
        %v349 = vld [vmem:[%s1 + $0x60] sm:$0xff]
        %v350 = vld [vmem:[%s1 + $0x68] sm:$0xff]
        %v351 = vld [vmem:[%s1 + $0x70] sm:$0xff]
        %v352 = vld [vmem:[%s1 + $0x78] sm:$0xff]
        %v353 = vld [vmem:[%s6] sm:$0xf]
        %v355 = vlaneseq
        %v356 = vshrl.u32 %v355, 7
        %v357 = vsub.s32 0, %v356
        %v358 = vrot.slane %v353, %v357
        %v359 = vlaneseq
        %v360 = vshrl.u32 %v359, 7
        %v361 = vsub.s32 1, %v360
        %v362 = vrot.slane %v353, %v361
        %v363 = vlaneseq
        %v364 = vshrl.u32 %v363, 7
        %v365 = vsub.s32 2, %v364
        %v366 = vrot.slane %v353, %v365
        %v367 = vlaneseq
        %v368 = vshrl.u32 %v367, 7
        %v369 = vsub.s32 3, %v368
        %v370 = vrot.slane %v353, %v369
        %v391 = vunpack.c.l.b16 %v337
        %v392 = vunpack.c.h.b16 %v337
        %v393 = vunpack.c.l.b16 %v338
        %v394 = vunpack.c.h.b16 %v338
        %v395 = vunpack.c.l.b16 %v339
        %v396 = vunpack.c.h.b16 %v339
        %v397 = vunpack.c.l.b16 %v340
        %v398 = vunpack.c.h.b16 %v340
        %v399 = vunpack.c.l.b16 %v341
        %v400 = vunpack.c.h.b16 %v341
        %v401 = vunpack.c.l.b16 %v342
        %v402 = vunpack.c.h.b16 %v342
        %v403 = vunpack.c.l.b16 %v343
        %v404 = vunpack.c.h.b16 %v343
        %v405 = vunpack.c.l.b16 %v344
        %v406 = vunpack.c.h.b16 %v344
        %v407 = vunpack.c.l.b16 %v345
        %v408 = vunpack.c.h.b16 %v345
        %v409 = vunpack.c.l.b16 %v346
        %v410 = vunpack.c.h.b16 %v346
        %v411 = vunpack.c.l.b16 %v347
        %v412 = vunpack.c.h.b16 %v347
        %v413 = vunpack.c.l.b16 %v348
        %v414 = vunpack.c.h.b16 %v348
        %v415 = vunpack.c.l.b16 %v349
        %v416 = vunpack.c.h.b16 %v349
        %v417 = vunpack.c.l.b16 %v350
        %v418 = vunpack.c.h.b16 %v350
        %v419 = vunpack.c.l.b16 %v351
        %v420 = vunpack.c.h.b16 %v351
        %v421 = vunpack.c.l.b16 %v352
        %v422 = vunpack.c.h.b16 %v352
        %v423 = vpack.c.b16 %v395, %v391
        %v424 = vpack.c.b16 %v396, %v392
        %v425 = vpack.c.b16 %v397, %v393
        %v426 = vpack.c.b16 %v398, %v394
        %v427 = vpack.c.b16 %v403, %v399
        %v428 = vpack.c.b16 %v404, %v400
        %v429 = vpack.c.b16 %v405, %v401
        %v430 = vpack.c.b16 %v406, %v402
        %v431 = vpack.c.b16 %v411, %v407
        %v432 = vpack.c.b16 %v412, %v408
        %v433 = vpack.c.b16 %v413, %v409
        %v434 = vpack.c.b16 %v414, %v410
        %v435 = vpack.c.b16 %v419, %v415
        %v436 = vpack.c.b16 %v420, %v416
        %v437 = vpack.c.b16 %v421, %v417
        %v438 = vpack.c.b16 %v422, %v418
        %vm455 = vcmask 523264
        %v457 = vsel %vm455, %v336, 0
        %459 = vmatprep.subr.bf16.mxu0 %v424
        %460 = vmatpush1.bf16.msra.mxu0 %v423
        %461 = vmatprep.subr.bf16.mxu0 %v428
        %462 = vmatpush1.bf16.msra.mxu0 %v427
        %463 = vmatprep.subr.bf16.mxu0 %v432
        %464 = vmatpush1.bf16.msra.mxu0 %v431
        %465 = vmatprep.subr.bf16.mxu0 %v436
        %466 = vmatpush1.bf16.msra.mxu0 %v435
        %467 = vmatprep.subr.bf16.mxu0 0
        %468 = vmatpush1.bf16.msra.mxu0 0
        %469 = vmatprep.subr.bf16.mxu0 0
        %470 = vmatpush1.bf16.msra.mxu0 0
        %471 = vmatprep.subr.bf16.mxu0 0
        %472 = vmatpush1.bf16.msra.mxu0 0
        %473 = vmatprep.subr.bf16.mxu0 0
        %474 = vmatpush1.bf16.msra.mxu0 0
        %475 = vmatprep.subr.bf16.mxu0 0
        %476 = vmatpush1.bf16.msra.mxu0 0
        %477 = vmatprep.subr.bf16.mxu0 0
        %478 = vmatpush1.bf16.msra.mxu0 0
        %479 = vmatprep.subr.bf16.mxu0 0
        %480 = vmatpush1.bf16.msra.mxu0 0
        %481 = vmatprep.subr.bf16.mxu0 0
        %482 = vmatpush1.bf16.msra.mxu0 0
        %483 = vmatprep.subr.bf16.mxu0 0
        %484 = vmatpush1.bf16.msra.mxu0 0
        %485 = vmatprep.subr.bf16.mxu0 0
        %486 = vmatpush1.bf16.msra.mxu0 0
        %487 = vmatprep.subr.bf16.mxu0 0
        %488 = vmatpush1.bf16.msra.mxu0 0
        %489 = vmatprep.subr.bf16.mxu0 0
        %490 = vmatpush1.bf16.msra.mxu0 0
        %491 = vmatprep.mubr.bf16.mxu0 0
        %492 = vmatmul.mubr.bf16.gmra.mrb[0].mxu0 %v457
        %v493 = vpop.f32.mrb[0].mxu0
        %v494 = vadd.f32 %v358, %v493
        %v495 = vpop.f32.mrb[0].mxu0
        %v496 = vadd.f32 %v362, %v495
        %v497 = vpop.f32.mrb[0].mxu0
        %v498 = vadd.f32 %v358, %v497
        %v499 = vpop.f32.mrb[0].mxu0
        %v500 = vadd.f32 %v362, %v499
        %501 = vdwg.mxu0
        %502 = vmatprep.subr.bf16.mxu0 %v426
        %503 = vmatpush1.bf16.msra.mxu0 %v425
        %504 = vmatprep.subr.bf16.mxu0 %v430
        %505 = vmatpush1.bf16.msra.mxu0 %v429
        %506 = vmatprep.subr.bf16.mxu0 %v434
        %507 = vmatpush1.bf16.msra.mxu0 %v433
        %508 = vmatprep.subr.bf16.mxu0 %v438
        %509 = vmatpush1.bf16.msra.mxu0 %v437
        %510 = vmatprep.subr.bf16.mxu0 0
        %511 = vmatpush1.bf16.msra.mxu0 0
        %512 = vmatprep.subr.bf16.mxu0 0
        %513 = vmatpush1.bf16.msra.mxu0 0
        %514 = vmatprep.subr.bf16.mxu0 0
        %515 = vmatpush1.bf16.msra.mxu0 0
        %516 = vmatprep.subr.bf16.mxu0 0
        %517 = vmatpush1.bf16.msra.mxu0 0
        %518 = vmatprep.subr.bf16.mxu0 0
        %519 = vmatpush1.bf16.msra.mxu0 0
        %520 = vmatprep.subr.bf16.mxu0 0
        %521 = vmatpush1.bf16.msra.mxu0 0
        %522 = vmatprep.subr.bf16.mxu0 0
        %523 = vmatpush1.bf16.msra.mxu0 0
        %524 = vmatprep.subr.bf16.mxu0 0
        %525 = vmatpush1.bf16.msra.mxu0 0
        %526 = vmatprep.subr.bf16.mxu0 0
        %527 = vmatpush1.bf16.msra.mxu0 0
        %528 = vmatprep.subr.bf16.mxu0 0
        %529 = vmatpush1.bf16.msra.mxu0 0
        %530 = vmatprep.subr.bf16.mxu0 0
        %531 = vmatpush1.bf16.msra.mxu0 0
        %532 = vmatprep.subr.bf16.mxu0 0
        %533 = vmatpush1.bf16.msra.mxu0 0
        %534 = vmatprep.mubr.bf16.mxu0 0
        %535 = vmatmul.mubr.bf16.gmra.mrb[0].mxu0 %v457
        %v536 = vpop.f32.mrb[0].mxu0
        %v537 = vadd.f32 %v366, %v536
        %v538 = vpop.f32.mrb[0].mxu0
        %v539 = vadd.f32 %v370, %v538
        %v540 = vpop.f32.mrb[0].mxu0
        %v541 = vadd.f32 %v366, %v540
        %v542 = vpop.f32.mrb[0].mxu0
        %v543 = vadd.f32 %v370, %v542
        %544 = vdwg.mxu0
        %v545 = vmax.f32 %v494, 0.0
        %v546 = vmax.f32 %v496, 0.0
        %v547 = vmax.f32 %v537, 0.0
        %v548 = vmax.f32 %v539, 0.0
        %v549 = vmax.f32 %v498, 0.0
        %v550 = vmax.f32 %v500, 0.0
        %v551 = vmax.f32 %v541, 0.0
        %v552 = vmax.f32 %v543, 0.0
        %v553 = vpack.c.bf16 %v549, %v545
        %v554 = vpack.c.bf16 %v550, %v546
        %v555 = vpack.c.bf16 %v551, %v547
        %v556 = vpack.c.bf16 %v552, %v548
        %v557 = vld [vmem:[#allocation2] sm:$0xff]
        %v558 = vld [vmem:[#allocation2 + $0x8] sm:$0xff]
        %v559 = vld [vmem:[#allocation2 + $0x10] sm:$0xff]
        %v560 = vld [vmem:[#allocation2 + $0x18] sm:$0xff]
        %v561 = vld [vmem:[#allocation2 + $0x20] sm:$0xff]
        %v562 = vld [vmem:[#allocation2 + $0x28] sm:$0xff]
        %v563 = vld [vmem:[#allocation2 + $0x30] sm:$0xff]
        %v564 = vld [vmem:[#allocation2 + $0x38] sm:$0xff]
        %v565 = vld [vmem:[#allocation2 + $0x40] sm:$0xff]
        %v566 = vld [vmem:[#allocation2 + $0x48] sm:$0xff]
        %v567 = vld [vmem:[#allocation2 + $0x50] sm:$0xff]
        %v568 = vld [vmem:[#allocation2 + $0x58] sm:$0xff]
        %v569 = vld [vmem:[#allocation2 + $0x60] sm:$0xff]
        %v570 = vld [vmem:[#allocation2 + $0x68] sm:$0xff]
        %v571 = vld [vmem:[#allocation2 + $0x70] sm:$0xff]
        %v572 = vld [vmem:[#allocation2 + $0x78] sm:$0xff]
        %v573 = vld [vmem:[#allocation2 + $0x80] sm:$0xff]
        %v574 = vld [vmem:[#allocation2 + $0x88] sm:$0xff]
        %v575 = vld [vmem:[#allocation2 + $0x90] sm:$0xff]
        %v576 = vld [vmem:[#allocation2 + $0x98] sm:$0xff]
        %v577 = vld [vmem:[#allocation2 + $0xa0] sm:$0xff]
        %v578 = vld [vmem:[#allocation2 + $0xa8] sm:$0xff]
        %v579 = vld [vmem:[#allocation2 + $0xb0] sm:$0xff]
        %v580 = vld [vmem:[#allocation2 + $0xb8] sm:$0xff]
        %v581 = vld [vmem:[#allocation2 + $0xc0] sm:$0xff]
        %v582 = vld [vmem:[#allocation2 + $0xc8] sm:$0xff]
        %v583 = vld [vmem:[#allocation2 + $0xd0] sm:$0xff]
        %v584 = vld [vmem:[#allocation2 + $0xd8] sm:$0xff]
        %v585 = vld [vmem:[#allocation2 + $0xe0] sm:$0xff]
        %v586 = vld [vmem:[#allocation2 + $0xe8] sm:$0xff]
        %v587 = vld [vmem:[#allocation2 + $0xf0] sm:$0xff]
        %v588 = vld [vmem:[#allocation2 + $0xf8] sm:$0xff]
        %v589 = vld [vmem:[#allocation2 + $0x100] sm:$0xff]
        %v590 = vld [vmem:[#allocation2 + $0x108] sm:$0xff]
        %v591 = vld [vmem:[#allocation2 + $0x110] sm:$0xff]
        %v592 = vld [vmem:[#allocation2 + $0x118] sm:$0xff]
        %v593 = vld [vmem:[#allocation2 + $0x120] sm:$0xff]
        %v594 = vld [vmem:[#allocation2 + $0x128] sm:$0xff]
        %v595 = vld [vmem:[#allocation2 + $0x130] sm:$0xff]
        %v596 = vld [vmem:[#allocation2 + $0x138] sm:$0xff]
        %v597 = vld [vmem:[#allocation2 + $0x140] sm:$0xff]
        %v598 = vld [vmem:[#allocation2 + $0x148] sm:$0xff]
        %v599 = vld [vmem:[#allocation2 + $0x150] sm:$0xff]
        %v600 = vld [vmem:[#allocation2 + $0x158] sm:$0xff]
        %v601 = vld [vmem:[#allocation2 + $0x160] sm:$0xff]
        %v602 = vld [vmem:[#allocation2 + $0x168] sm:$0xff]
        %v603 = vld [vmem:[#allocation2 + $0x170] sm:$0xff]
        %v604 = vld [vmem:[#allocation2 + $0x178] sm:$0xff]
        %v605 = vld [vmem:[#allocation2 + $0x180] sm:$0xff]
        %v606 = vld [vmem:[#allocation2 + $0x188] sm:$0xff]
        %v607 = vld [vmem:[#allocation2 + $0x190] sm:$0xff]
        %v608 = vld [vmem:[#allocation2 + $0x198] sm:$0xff]
        %v609 = vld [vmem:[#allocation2 + $0x1a0] sm:$0xff]
        %v610 = vld [vmem:[#allocation2 + $0x1a8] sm:$0xff]
        %v611 = vld [vmem:[#allocation2 + $0x1b0] sm:$0xff]
        %v612 = vld [vmem:[#allocation2 + $0x1b8] sm:$0xff]
        %v613 = vld [vmem:[#allocation2 + $0x1c0] sm:$0xff]
        %v614 = vld [vmem:[#allocation2 + $0x1c8] sm:$0xff]
        %v615 = vld [vmem:[#allocation2 + $0x1d0] sm:$0xff]
        %v616 = vld [vmem:[#allocation2 + $0x1d8] sm:$0xff]
        %v617 = vld [vmem:[#allocation2 + $0x1e0] sm:$0xff]
        %v618 = vld [vmem:[#allocation2 + $0x1e8] sm:$0xff]
        %v619 = vld [vmem:[#allocation2 + $0x1f0] sm:$0xff]
        %v620 = vld [vmem:[#allocation2 + $0x1f8] sm:$0xff]
        %v621 = vld [vmem:[%s6 + $0x4] sm:$0x3]
        %v623 = vlaneseq
        %v624 = vshrl.u32 %v623, 7
        %v625 = vsub.s32 0, %v624
        %v626 = vrot.slane %v621, %v625
        %v627 = vlaneseq
        %v628 = vshrl.u32 %v627, 7
        %v629 = vsub.s32 1, %v628
        %v630 = vrot.slane %v621, %v629
        %v697 = vunpack.c.l.b16 %v557
        %v698 = vunpack.c.h.b16 %v557
        %v699 = vunpack.c.l.b16 %v558
        %v700 = vunpack.c.h.b16 %v558
        %v701 = vunpack.c.l.b16 %v559
        %v702 = vunpack.c.h.b16 %v559
        %v703 = vunpack.c.l.b16 %v560
        %v704 = vunpack.c.h.b16 %v560
        %v705 = vunpack.c.l.b16 %v561
        %v706 = vunpack.c.h.b16 %v561
        %v707 = vunpack.c.l.b16 %v562
        %v708 = vunpack.c.h.b16 %v562
        %v709 = vunpack.c.l.b16 %v563
        %v710 = vunpack.c.h.b16 %v563
        %v711 = vunpack.c.l.b16 %v564
        %v712 = vunpack.c.h.b16 %v564
        %v713 = vunpack.c.l.b16 %v565
        %v714 = vunpack.c.h.b16 %v565
        %v715 = vunpack.c.l.b16 %v566
        %v716 = vunpack.c.h.b16 %v566
        %v717 = vunpack.c.l.b16 %v567
        %v718 = vunpack.c.h.b16 %v567
        %v719 = vunpack.c.l.b16 %v568
        %v720 = vunpack.c.h.b16 %v568
        %v721 = vunpack.c.l.b16 %v569
        %v722 = vunpack.c.h.b16 %v569
        %v723 = vunpack.c.l.b16 %v570
        %v724 = vunpack.c.h.b16 %v570
        %v725 = vunpack.c.l.b16 %v571
        %v726 = vunpack.c.h.b16 %v571
        %v727 = vunpack.c.l.b16 %v572
        %v728 = vunpack.c.h.b16 %v572
        %v729 = vunpack.c.l.b16 %v573
        %v730 = vunpack.c.h.b16 %v573
        %v731 = vunpack.c.l.b16 %v574
        %v732 = vunpack.c.h.b16 %v574
        %v733 = vunpack.c.l.b16 %v575
        %v734 = vunpack.c.h.b16 %v575
        %v735 = vunpack.c.l.b16 %v576
        %v736 = vunpack.c.h.b16 %v576
        %v737 = vunpack.c.l.b16 %v577
        %v738 = vunpack.c.h.b16 %v577
        %v739 = vunpack.c.l.b16 %v578
        %v740 = vunpack.c.h.b16 %v578
        %v741 = vunpack.c.l.b16 %v579
        %v742 = vunpack.c.h.b16 %v579
        %v743 = vunpack.c.l.b16 %v580
        %v744 = vunpack.c.h.b16 %v580
        %v745 = vunpack.c.l.b16 %v581
        %v746 = vunpack.c.h.b16 %v581
        %v747 = vunpack.c.l.b16 %v582
        %v748 = vunpack.c.h.b16 %v582
        %v749 = vunpack.c.l.b16 %v583
        %v750 = vunpack.c.h.b16 %v583
        %v751 = vunpack.c.l.b16 %v584
        %v752 = vunpack.c.h.b16 %v584
        %v753 = vunpack.c.l.b16 %v585
        %v754 = vunpack.c.h.b16 %v585
        %v755 = vunpack.c.l.b16 %v586
        %v756 = vunpack.c.h.b16 %v586
        %v757 = vunpack.c.l.b16 %v587
        %v758 = vunpack.c.h.b16 %v587
        %v759 = vunpack.c.l.b16 %v588
        %v760 = vunpack.c.h.b16 %v588
        %v761 = vunpack.c.l.b16 %v589
        %v762 = vunpack.c.h.b16 %v589
        %v763 = vunpack.c.l.b16 %v590
        %v764 = vunpack.c.h.b16 %v590
        %v765 = vunpack.c.l.b16 %v591
        %v766 = vunpack.c.h.b16 %v591
        %v767 = vunpack.c.l.b16 %v592
        %v768 = vunpack.c.h.b16 %v592
        %v769 = vunpack.c.l.b16 %v593
        %v770 = vunpack.c.h.b16 %v593
        %v771 = vunpack.c.l.b16 %v594
        %v772 = vunpack.c.h.b16 %v594
        %v773 = vunpack.c.l.b16 %v595
        %v774 = vunpack.c.h.b16 %v595
        %v775 = vunpack.c.l.b16 %v596
        %v776 = vunpack.c.h.b16 %v596
        %v777 = vunpack.c.l.b16 %v597
        %v778 = vunpack.c.h.b16 %v597
        %v779 = vunpack.c.l.b16 %v598
        %v780 = vunpack.c.h.b16 %v598
        %v781 = vunpack.c.l.b16 %v599
        %v782 = vunpack.c.h.b16 %v599
        %v783 = vunpack.c.l.b16 %v600
        %v784 = vunpack.c.h.b16 %v600
        %v785 = vunpack.c.l.b16 %v601
        %v786 = vunpack.c.h.b16 %v601
        %v787 = vunpack.c.l.b16 %v602
        %v788 = vunpack.c.h.b16 %v602
        %v789 = vunpack.c.l.b16 %v603
        %v790 = vunpack.c.h.b16 %v603
        %v791 = vunpack.c.l.b16 %v604
        %v792 = vunpack.c.h.b16 %v604
        %v793 = vunpack.c.l.b16 %v605
        %v794 = vunpack.c.h.b16 %v605
        %v795 = vunpack.c.l.b16 %v606
        %v796 = vunpack.c.h.b16 %v606
        %v797 = vunpack.c.l.b16 %v607
        %v798 = vunpack.c.h.b16 %v607
        %v799 = vunpack.c.l.b16 %v608
        %v800 = vunpack.c.h.b16 %v608
        %v801 = vunpack.c.l.b16 %v609
        %v802 = vunpack.c.h.b16 %v609
        %v803 = vunpack.c.l.b16 %v610
        %v804 = vunpack.c.h.b16 %v610
        %v805 = vunpack.c.l.b16 %v611
        %v806 = vunpack.c.h.b16 %v611
        %v807 = vunpack.c.l.b16 %v612
        %v808 = vunpack.c.h.b16 %v612
        %v809 = vunpack.c.l.b16 %v613
        %v810 = vunpack.c.h.b16 %v613
        %v811 = vunpack.c.l.b16 %v614
        %v812 = vunpack.c.h.b16 %v614
        %v813 = vunpack.c.l.b16 %v615
        %v814 = vunpack.c.h.b16 %v615
        %v815 = vunpack.c.l.b16 %v616
        %v816 = vunpack.c.h.b16 %v616
        %v817 = vunpack.c.l.b16 %v617
        %v818 = vunpack.c.h.b16 %v617
        %v819 = vunpack.c.l.b16 %v618
        %v820 = vunpack.c.h.b16 %v618
        %v821 = vunpack.c.l.b16 %v619
        %v822 = vunpack.c.h.b16 %v619
        %v823 = vunpack.c.l.b16 %v620
        %v824 = vunpack.c.h.b16 %v620
        %v825 = vpack.c.b16 %v699, %v697
        %v826 = vpack.c.b16 %v700, %v698
        %v827 = vpack.c.b16 %v703, %v701
        %v828 = vpack.c.b16 %v704, %v702
        %v829 = vpack.c.b16 %v707, %v705
        %v830 = vpack.c.b16 %v708, %v706
        %v831 = vpack.c.b16 %v711, %v709
        %v832 = vpack.c.b16 %v712, %v710
        %v833 = vpack.c.b16 %v715, %v713
        %v834 = vpack.c.b16 %v716, %v714
        %v835 = vpack.c.b16 %v719, %v717
        %v836 = vpack.c.b16 %v720, %v718
        %v837 = vpack.c.b16 %v723, %v721
        %v838 = vpack.c.b16 %v724, %v722
        %v839 = vpack.c.b16 %v727, %v725
        %v840 = vpack.c.b16 %v728, %v726
        %v841 = vpack.c.b16 %v731, %v729
        %v842 = vpack.c.b16 %v732, %v730
        %v843 = vpack.c.b16 %v735, %v733
        %v844 = vpack.c.b16 %v736, %v734
        %v845 = vpack.c.b16 %v739, %v737
        %v846 = vpack.c.b16 %v740, %v738
        %v847 = vpack.c.b16 %v743, %v741
        %v848 = vpack.c.b16 %v744, %v742
        %v849 = vpack.c.b16 %v747, %v745
        %v850 = vpack.c.b16 %v748, %v746
        %v851 = vpack.c.b16 %v751, %v749
        %v852 = vpack.c.b16 %v752, %v750
        %v853 = vpack.c.b16 %v755, %v753
        %v854 = vpack.c.b16 %v756, %v754
        %v855 = vpack.c.b16 %v759, %v757
        %v856 = vpack.c.b16 %v760, %v758
        %v857 = vpack.c.b16 %v763, %v761
        %v858 = vpack.c.b16 %v764, %v762
        %v859 = vpack.c.b16 %v767, %v765
        %v860 = vpack.c.b16 %v768, %v766
        %v861 = vpack.c.b16 %v771, %v769
        %v862 = vpack.c.b16 %v772, %v770
        %v863 = vpack.c.b16 %v775, %v773
        %v864 = vpack.c.b16 %v776, %v774
        %v865 = vpack.c.b16 %v779, %v777
        %v866 = vpack.c.b16 %v780, %v778
        %v867 = vpack.c.b16 %v783, %v781
        %v868 = vpack.c.b16 %v784, %v782
        %v869 = vpack.c.b16 %v787, %v785
        %v870 = vpack.c.b16 %v788, %v786
        %v871 = vpack.c.b16 %v791, %v789
        %v872 = vpack.c.b16 %v792, %v790
        %v873 = vpack.c.b16 %v795, %v793
        %v874 = vpack.c.b16 %v796, %v794
        %v875 = vpack.c.b16 %v799, %v797
        %v876 = vpack.c.b16 %v800, %v798
        %v877 = vpack.c.b16 %v803, %v801
        %v878 = vpack.c.b16 %v804, %v802
        %v879 = vpack.c.b16 %v807, %v805
        %v880 = vpack.c.b16 %v808, %v806
        %v881 = vpack.c.b16 %v811, %v809
        %v882 = vpack.c.b16 %v812, %v810
        %v883 = vpack.c.b16 %v815, %v813
        %v884 = vpack.c.b16 %v816, %v814
        %v885 = vpack.c.b16 %v819, %v817
        %v886 = vpack.c.b16 %v820, %v818
        %v887 = vpack.c.b16 %v823, %v821
        %v888 = vpack.c.b16 %v824, %v822
        %953 = vmatprep.subr.bf16.mxu0 %v826
        %954 = vmatpush1.bf16.msra.mxu0 %v825
        %955 = vmatprep.subr.bf16.mxu0 %v828
        %956 = vmatpush1.bf16.msra.mxu0 %v827
        %957 = vmatprep.subr.bf16.mxu0 %v830
        %958 = vmatpush1.bf16.msra.mxu0 %v829
        %959 = vmatprep.subr.bf16.mxu0 %v832
        %960 = vmatpush1.bf16.msra.mxu0 %v831
        %961 = vmatprep.subr.bf16.mxu0 %v834
        %962 = vmatpush1.bf16.msra.mxu0 %v833
        %963 = vmatprep.subr.bf16.mxu0 %v836
        %964 = vmatpush1.bf16.msra.mxu0 %v835
        %965 = vmatprep.subr.bf16.mxu0 %v838
        %966 = vmatpush1.bf16.msra.mxu0 %v837
        %967 = vmatprep.subr.bf16.mxu0 %v840
        %968 = vmatpush1.bf16.msra.mxu0 %v839
        %969 = vmatprep.subr.bf16.mxu0 %v842
        %970 = vmatpush1.bf16.msra.mxu0 %v841
        %971 = vmatprep.subr.bf16.mxu0 %v844
        %972 = vmatpush1.bf16.msra.mxu0 %v843
        %973 = vmatprep.subr.bf16.mxu0 %v846
        %974 = vmatpush1.bf16.msra.mxu0 %v845
        %975 = vmatprep.subr.bf16.mxu0 %v848
        %976 = vmatpush1.bf16.msra.mxu0 %v847
        %977 = vmatprep.subr.bf16.mxu0 %v850
        %978 = vmatpush1.bf16.msra.mxu0 %v849
        %979 = vmatprep.subr.bf16.mxu0 %v852
        %980 = vmatpush1.bf16.msra.mxu0 %v851
        %981 = vmatprep.subr.bf16.mxu0 %v854
        %982 = vmatpush1.bf16.msra.mxu0 %v853
        %983 = vmatprep.subr.bf16.mxu0 %v856
        %984 = vmatpush1.bf16.msra.mxu0 %v855
        %985 = vmatprep.mubr.bf16.mxu0 %v554
        %986 = vmatmul.mubr.bf16.gmra.mrb[0].mxu0 %v553
        %v987 = vpop.f32.mrb[0].mxu0
        %v988 = vadd.f32 %v626, %v987
        %v989 = vpop.f32.mrb[0].mxu0
        %v990 = vadd.f32 %v630, %v989
        %v991 = vpop.f32.mrb[0].mxu0
        %v992 = vadd.f32 %v626, %v991
        %v993 = vpop.f32.mrb[0].mxu0
        %v994 = vadd.f32 %v630, %v993
        %995 = vdwg.mxu0
        %996 = vmatprep.subr.bf16.mxu0 %v858
        %997 = vmatpush1.bf16.msra.mxu0 %v857
        %998 = vmatprep.subr.bf16.mxu0 %v860
        %999 = vmatpush1.bf16.msra.mxu0 %v859
        %1000 = vmatprep.subr.bf16.mxu0 %v862
        %1001 = vmatpush1.bf16.msra.mxu0 %v861
        %1002 = vmatprep.subr.bf16.mxu0 %v864
        %1003 = vmatpush1.bf16.msra.mxu0 %v863
        %1004 = vmatprep.subr.bf16.mxu0 %v866
        %1005 = vmatpush1.bf16.msra.mxu0 %v865
        %1006 = vmatprep.subr.bf16.mxu0 %v868
        %1007 = vmatpush1.bf16.msra.mxu0 %v867
        %1008 = vmatprep.subr.bf16.mxu0 %v870
        %1009 = vmatpush1.bf16.msra.mxu0 %v869
        %1010 = vmatprep.subr.bf16.mxu0 %v872
        %1011 = vmatpush1.bf16.msra.mxu0 %v871
        %1012 = vmatprep.subr.bf16.mxu0 %v874
        %1013 = vmatpush1.bf16.msra.mxu0 %v873
        %1014 = vmatprep.subr.bf16.mxu0 %v876
        %1015 = vmatpush1.bf16.msra.mxu0 %v875
        %1016 = vmatprep.subr.bf16.mxu0 %v878
        %1017 = vmatpush1.bf16.msra.mxu0 %v877
        %1018 = vmatprep.subr.bf16.mxu0 %v880
        %1019 = vmatpush1.bf16.msra.mxu0 %v879
        %1020 = vmatprep.subr.bf16.mxu0 %v882
        %1021 = vmatpush1.bf16.msra.mxu0 %v881
        %1022 = vmatprep.subr.bf16.mxu0 %v884
        %1023 = vmatpush1.bf16.msra.mxu0 %v883
        %1024 = vmatprep.subr.bf16.mxu0 %v886
        %1025 = vmatpush1.bf16.msra.mxu0 %v885
        %1026 = vmatprep.subr.bf16.mxu0 %v888
        %1027 = vmatpush1.bf16.msra.mxu0 %v887
        %1028 = vmatprep.mubr.bf16.mxu0 %v556
        %1029 = vmatmul.mubr.bf16.gmra.mrb[0].mxu0 %v555
        %v1030 = vpop.f32.mrb[0].mxu0
        %v1031 = vadd.f32 %v988, %v1030
        %v1032 = vpop.f32.mrb[0].mxu0
        %v1033 = vadd.f32 %v990, %v1032
        %v1034 = vpop.f32.mrb[0].mxu0
        %v1035 = vadd.f32 %v992, %v1034
        %v1036 = vpop.f32.mrb[0].mxu0
        %v1037 = vadd.f32 %v994, %v1036
        %1038 = vdwg.mxu0
        %v1039 = vmax.f32 %v1031, 0.0
        %v1040 = vmax.f32 %v1033, 0.0
        %v1041 = vmax.f32 %v1035, 0.0
        %v1042 = vmax.f32 %v1037, 0.0
        %v1043 = vpack.c.bf16 %v1041, %v1039
        %v1044 = vpack.c.bf16 %v1042, %v1040
        %v1045 = vld [vmem:[%s3] sm:$0xf]
        %v1046 = vld [vmem:[%s3 + $0x4] sm:$0xf]
        %v1047 = vld [vmem:[%s3 + $0x8] sm:$0xf]
        %v1048 = vld [vmem:[%s3 + $0xc] sm:$0xf]
        %v1049 = vld [vmem:[%s3 + $0x10] sm:$0xf]
        %v1050 = vld [vmem:[%s3 + $0x14] sm:$0xf]
        %v1051 = vld [vmem:[%s3 + $0x18] sm:$0xf]
        %v1052 = vld [vmem:[%s3 + $0x1c] sm:$0xf]
        %v1053 = vld [vmem:[%s3 + $0x20] sm:$0xf]
        %v1054 = vld [vmem:[%s3 + $0x24] sm:$0xf]
        %v1055 = vld [vmem:[%s3 + $0x28] sm:$0xf]
        %v1056 = vld [vmem:[%s3 + $0x2c] sm:$0xf]
        %v1057 = vld [vmem:[%s3 + $0x30] sm:$0xf]
        %v1058 = vld [vmem:[%s3 + $0x34] sm:$0xf]
        %v1059 = vld [vmem:[%s3 + $0x38] sm:$0xf]
        %v1060 = vld [vmem:[%s3 + $0x3c] sm:$0xf]
        %v1061 = vld [vmem:[%s3 + $0x40] sm:$0xf]
        %v1062 = vld [vmem:[%s3 + $0x44] sm:$0xf]
        %v1063 = vld [vmem:[%s3 + $0x48] sm:$0xf]
        %v1064 = vld [vmem:[%s3 + $0x4c] sm:$0xf]
        %v1065 = vld [vmem:[%s3 + $0x50] sm:$0xf]
        %v1066 = vld [vmem:[%s3 + $0x54] sm:$0xf]
        %v1067 = vld [vmem:[%s3 + $0x58] sm:$0xf]
        %v1068 = vld [vmem:[%s3 + $0x5c] sm:$0xf]
        %v1069 = vld [vmem:[%s3 + $0x60] sm:$0xf]
        %v1070 = vld [vmem:[%s3 + $0x64] sm:$0xf]
        %v1071 = vld [vmem:[%s3 + $0x68] sm:$0xf]
        %v1072 = vld [vmem:[%s3 + $0x6c] sm:$0xf]
        %v1073 = vld [vmem:[%s3 + $0x70] sm:$0xf]
        %v1074 = vld [vmem:[%s3 + $0x74] sm:$0xf]
        %v1075 = vld [vmem:[%s3 + $0x78] sm:$0xf]
        %v1076 = vld [vmem:[%s3 + $0x7c] sm:$0xf]
        %v1077 = vld [vmem:[%s6 + $0x6] sm:$0x1]
        %v1079 = vlaneseq
        %v1080 = vshrl.u32 %v1079, 7
        %v1081 = vsub.s32 0, %v1080
        %v1082 = vrot.slane %v1077, %v1081
        %v1116 = vunpack.c.l.b16 %v1045
        %v1117 = vunpack.c.l.b16 %v1046
        %v1118 = vunpack.c.l.b16 %v1047
        %v1119 = vunpack.c.l.b16 %v1048
        %v1120 = vunpack.c.l.b16 %v1049
        %v1121 = vunpack.c.l.b16 %v1050
        %v1122 = vunpack.c.l.b16 %v1051
        %v1123 = vunpack.c.l.b16 %v1052
        %v1124 = vunpack.c.l.b16 %v1053
        %v1125 = vunpack.c.l.b16 %v1054
        %v1126 = vunpack.c.l.b16 %v1055
        %v1127 = vunpack.c.l.b16 %v1056
        %v1128 = vunpack.c.l.b16 %v1057
        %v1129 = vunpack.c.l.b16 %v1058
        %v1130 = vunpack.c.l.b16 %v1059
        %v1131 = vunpack.c.l.b16 %v1060
        %v1132 = vunpack.c.l.b16 %v1061
        %v1133 = vunpack.c.l.b16 %v1062
        %v1134 = vunpack.c.l.b16 %v1063
        %v1135 = vunpack.c.l.b16 %v1064
        %v1136 = vunpack.c.l.b16 %v1065
        %v1137 = vunpack.c.l.b16 %v1066
        %v1138 = vunpack.c.l.b16 %v1067
        %v1139 = vunpack.c.l.b16 %v1068
        %v1140 = vunpack.c.l.b16 %v1069
        %v1141 = vunpack.c.l.b16 %v1070
        %v1142 = vunpack.c.l.b16 %v1071
        %v1143 = vunpack.c.l.b16 %v1072
        %v1144 = vunpack.c.l.b16 %v1073
        %v1145 = vunpack.c.l.b16 %v1074
        %v1146 = vunpack.c.l.b16 %v1075
        %v1147 = vunpack.c.l.b16 %v1076
        %v1148 = vpack.c.b16 %v1117, %v1116
        %v1149 = vpack.c.b16 %v1119, %v1118
        %v1150 = vpack.c.b16 %v1121, %v1120
        %v1151 = vpack.c.b16 %v1123, %v1122
        %v1152 = vpack.c.b16 %v1125, %v1124
        %v1153 = vpack.c.b16 %v1127, %v1126
        %v1154 = vpack.c.b16 %v1129, %v1128
        %v1155 = vpack.c.b16 %v1131, %v1130
        %v1156 = vpack.c.b16 %v1133, %v1132
        %v1157 = vpack.c.b16 %v1135, %v1134
        %v1158 = vpack.c.b16 %v1137, %v1136
        %v1159 = vpack.c.b16 %v1139, %v1138
        %v1160 = vpack.c.b16 %v1141, %v1140
        %v1161 = vpack.c.b16 %v1143, %v1142
        %v1162 = vpack.c.b16 %v1145, %v1144
        %v1163 = vpack.c.b16 %v1147, %v1146
        %1180 = vmatprep.subr.bf16.mxu0 0
        %1181 = vmatpush1.bf16.msra.mxu0 %v1148
        %1182 = vmatprep.subr.bf16.mxu0 0
        %1183 = vmatpush1.bf16.msra.mxu0 %v1149
        %1184 = vmatprep.subr.bf16.mxu0 0
        %1185 = vmatpush1.bf16.msra.mxu0 %v1150
        %1186 = vmatprep.subr.bf16.mxu0 0
        %1187 = vmatpush1.bf16.msra.mxu0 %v1151
        %1188 = vmatprep.subr.bf16.mxu0 0
        %1189 = vmatpush1.bf16.msra.mxu0 %v1152
        %1190 = vmatprep.subr.bf16.mxu0 0
        %1191 = vmatpush1.bf16.msra.mxu0 %v1153
        %1192 = vmatprep.subr.bf16.mxu0 0
        %1193 = vmatpush1.bf16.msra.mxu0 %v1154
        %1194 = vmatprep.subr.bf16.mxu0 0
        %1195 = vmatpush1.bf16.msra.mxu0 %v1155
        %1196 = vmatprep.subr.bf16.mxu0 0
        %1197 = vmatpush1.bf16.msra.mxu0 %v1156
        %1198 = vmatprep.subr.bf16.mxu0 0
        %1199 = vmatpush1.bf16.msra.mxu0 %v1157
        %1200 = vmatprep.subr.bf16.mxu0 0
        %1201 = vmatpush1.bf16.msra.mxu0 %v1158
        %1202 = vmatprep.subr.bf16.mxu0 0
        %1203 = vmatpush1.bf16.msra.mxu0 %v1159
        %1204 = vmatprep.subr.bf16.mxu0 0
        %1205 = vmatpush1.bf16.msra.mxu0 %v1160
        %1206 = vmatprep.subr.bf16.mxu0 0
        %1207 = vmatpush1.bf16.msra.mxu0 %v1161
        %1208 = vmatprep.subr.bf16.mxu0 0
        %1209 = vmatpush1.bf16.msra.mxu0 %v1162
        %1210 = vmatprep.subr.bf16.mxu0 0
        %1211 = vmatpush1.bf16.msra.mxu0 %v1163
        %1212 = vmatprep.mubr.bf16.mxu0 %v1044
        %1213 = vmatmul.mubr.bf16.gmra.mrb[0].mxu0 %v1043
        %v1214 = vpop.f32.mrb[0].mxu0
        %v1215 = vadd.f32 %v1082, %v1214
        %v1216 = vpop.f32.mrb[0].mxu0
        %v1217 = vpop.f32.mrb[0].mxu0
        %v1218 = vadd.f32 %v1082, %v1217
        %v1219 = vpop.f32.mrb[0].mxu0
        %1220 = vdwg.mxu0
        %v1221 = vmax.f32 %v1215, 0.0
        %v1222 = vmax.f32 %v1218, 0.0
        %v1223 = vpack.c.bf16 %v1222, %v1221
        %v1224 = vld [vmem:[%s4] sm:$0xf]
        %v1225 = vld [vmem:[%s4 + $0x4] sm:$0xf]
        %v1226 = vld [vmem:[%s4 + $0x8] sm:$0xf]
        %v1227 = vld [vmem:[%s4 + $0xc] sm:$0xf]
        %v1228 = vld [vmem:[%s4 + $0x10] sm:$0xf]
        %v1229 = vld [vmem:[%s4 + $0x14] sm:$0xf]
        %v1230 = vld [vmem:[%s4 + $0x18] sm:$0xf]
        %v1231 = vld [vmem:[%s4 + $0x1c] sm:$0xf]
        %v1232 = vld [vmem:[%s4 + $0x20] sm:$0xf]
        %v1233 = vld [vmem:[%s4 + $0x24] sm:$0xf]
        %v1234 = vld [vmem:[%s4 + $0x28] sm:$0xf]
        %v1235 = vld [vmem:[%s4 + $0x2c] sm:$0xf]
        %v1236 = vld [vmem:[%s4 + $0x30] sm:$0xf]
        %v1237 = vld [vmem:[%s4 + $0x34] sm:$0xf]
        %v1238 = vld [vmem:[%s4 + $0x38] sm:$0xf]
        %v1239 = vld [vmem:[%s4 + $0x3c] sm:$0xf]
        %v1240 = vld [vmem:[%s6 + $0x7] sm:$0x1]
        %v1242 = vlaneseq
        %v1243 = vshrl.u32 %v1242, 7
        %v1244 = vsub.s32 0, %v1243
        %v1245 = vrot.slane %v1240, %v1244
        %v1263 = vunpack.c.l.b16 %v1224
        %v1264 = vunpack.c.l.b16 %v1225
        %v1265 = vunpack.c.l.b16 %v1226
        %v1266 = vunpack.c.l.b16 %v1227
        %v1267 = vunpack.c.l.b16 %v1228
        %v1268 = vunpack.c.l.b16 %v1229
        %v1269 = vunpack.c.l.b16 %v1230
        %v1270 = vunpack.c.l.b16 %v1231
        %v1271 = vunpack.c.l.b16 %v1232
        %v1272 = vunpack.c.l.b16 %v1233
        %v1273 = vunpack.c.l.b16 %v1234
        %v1274 = vunpack.c.l.b16 %v1235
        %v1275 = vunpack.c.l.b16 %v1236
        %v1276 = vunpack.c.l.b16 %v1237
        %v1277 = vunpack.c.l.b16 %v1238
        %v1278 = vunpack.c.l.b16 %v1239
        %v1279 = vpack.c.b16 %v1264, %v1263
        %v1280 = vpack.c.b16 %v1266, %v1265
        %v1281 = vpack.c.b16 %v1268, %v1267
        %v1282 = vpack.c.b16 %v1270, %v1269
        %v1283 = vpack.c.b16 %v1272, %v1271
        %v1284 = vpack.c.b16 %v1274, %v1273
        %v1285 = vpack.c.b16 %v1276, %v1275
        %v1286 = vpack.c.b16 %v1278, %v1277
        %1295 = vmatprep.subr.bf16.mxu0 0
        %1296 = vmatpush1.bf16.msra.mxu0 %v1279
        %1297 = vmatprep.subr.bf16.mxu0 0
        %1298 = vmatpush1.bf16.msra.mxu0 %v1280
        %1299 = vmatprep.subr.bf16.mxu0 0
        %1300 = vmatpush1.bf16.msra.mxu0 %v1281
        %1301 = vmatprep.subr.bf16.mxu0 0
        %1302 = vmatpush1.bf16.msra.mxu0 %v1282
        %1303 = vmatprep.subr.bf16.mxu0 0
        %1304 = vmatpush1.bf16.msra.mxu0 %v1283
        %1305 = vmatprep.subr.bf16.mxu0 0
        %1306 = vmatpush1.bf16.msra.mxu0 %v1284
        %1307 = vmatprep.subr.bf16.mxu0 0
        %1308 = vmatpush1.bf16.msra.mxu0 %v1285
        %1309 = vmatprep.subr.bf16.mxu0 0
        %1310 = vmatpush1.bf16.msra.mxu0 %v1286
        %1311 = vmatprep.subr.bf16.mxu0 0
        %1312 = vmatpush1.bf16.msra.mxu0 0
        %1313 = vmatprep.subr.bf16.mxu0 0
        %1314 = vmatpush1.bf16.msra.mxu0 0
        %1315 = vmatprep.subr.bf16.mxu0 0
        %1316 = vmatpush1.bf16.msra.mxu0 0
        %1317 = vmatprep.subr.bf16.mxu0 0
        %1318 = vmatpush1.bf16.msra.mxu0 0
        %1319 = vmatprep.subr.bf16.mxu0 0
        %1320 = vmatpush1.bf16.msra.mxu0 0
        %1321 = vmatprep.subr.bf16.mxu0 0
        %1322 = vmatpush1.bf16.msra.mxu0 0
        %1323 = vmatprep.subr.bf16.mxu0 0
        %1324 = vmatpush1.bf16.msra.mxu0 0
        %1325 = vmatprep.subr.bf16.mxu0 0
        %1326 = vmatpush1.bf16.msra.mxu0 0
        %1327 = vmatprep.mubr.bf16.mxu0 0
        %1328 = vmatmul.mubr.bf16.gmra.mrb[0].mxu0 %v1223
        %v1329 = vpop.f32.mrb[0].mxu0
        %v1330 = vadd.f32 %v1245, %v1329
        %v1331 = vpop.f32.mrb[0].mxu0
        %v1332 = vpop.f32.mrb[0].mxu0
        %v1333 = vadd.f32 %v1245, %v1332
        %v1334 = vpop.f32.mrb[0].mxu0
        %1335 = vdwg.mxu0
        %v1336 = vmax.f32 %v1330, 0.0
        %v1337 = vmax.f32 %v1333, 0.0
        %v1338 = vpack.c.bf16 %v1337, %v1336
        %v1339 = vld [vmem:[%s5] sm:$0xf]
        %v1340 = vld [vmem:[%s5 + $0x4] sm:$0xf]
        %v1341 = vld [vmem:[%s5 + $0x8] sm:$0xf]
        %v1342 = vld [vmem:[%s5 + $0xc] sm:$0xf]
        %v1343 = vld [vmem:[%s5 + $0x10] sm:$0xf]
        %v1344 = vld [vmem:[%s5 + $0x14] sm:$0xf]
        %v1345 = vld [vmem:[%s5 + $0x18] sm:$0xf]
        %v1346 = vld [vmem:[%s5 + $0x1c] sm:$0xf]
        %v1355 = vunpack.c.l.b16 %v1339
        %v1356 = vunpack.c.l.b16 %v1340
        %v1357 = vunpack.c.l.b16 %v1341
        %v1358 = vunpack.c.l.b16 %v1342
        %v1359 = vunpack.c.l.b16 %v1343
        %v1360 = vunpack.c.l.b16 %v1344
        %v1361 = vunpack.c.l.b16 %v1345
        %v1362 = vunpack.c.l.b16 %v1346
        %v1363 = vpack.c.b16 %v1356, %v1355
        %v1364 = vpack.c.b16 %v1358, %v1357
        %v1365 = vpack.c.b16 %v1360, %v1359
        %v1366 = vpack.c.b16 %v1362, %v1361
        %1371 = vrot.lane.b32.xlu0 %v1245, 64
        %v1372 = vpop.permute.xlu0 %1371
        %v1375 = vsel %vm455, %v1338, 0
        %1377 = vmatprep.subr.bf16.mxu0 0
        %1378 = vmatpush1.bf16.msra.mxu0 %v1363
        %1379 = vmatprep.subr.bf16.mxu0 0
        %1380 = vmatpush1.bf16.msra.mxu0 %v1364
        %1381 = vmatprep.subr.bf16.mxu0 0
        %1382 = vmatpush1.bf16.msra.mxu0 %v1365
        %1383 = vmatprep.subr.bf16.mxu0 0
        %1384 = vmatpush1.bf16.msra.mxu0 %v1366
        %1385 = vmatprep.subr.bf16.mxu0 0
        %1386 = vmatpush1.bf16.msra.mxu0 0
        %1387 = vmatprep.subr.bf16.mxu0 0
        %1388 = vmatpush1.bf16.msra.mxu0 0
        %1389 = vmatprep.subr.bf16.mxu0 0
        %1390 = vmatpush1.bf16.msra.mxu0 0
        %1391 = vmatprep.subr.bf16.mxu0 0
        %1392 = vmatpush1.bf16.msra.mxu0 0
        %1393 = vmatprep.subr.bf16.mxu0 0
        %1394 = vmatpush1.bf16.msra.mxu0 0
        %1395 = vmatprep.subr.bf16.mxu0 0
        %1396 = vmatpush1.bf16.msra.mxu0 0
        %1397 = vmatprep.subr.bf16.mxu0 0
        %1398 = vmatpush1.bf16.msra.mxu0 0
        %1399 = vmatprep.subr.bf16.mxu0 0
        %1400 = vmatpush1.bf16.msra.mxu0 0
        %1401 = vmatprep.subr.bf16.mxu0 0
        %1402 = vmatpush1.bf16.msra.mxu0 0
        %1403 = vmatprep.subr.bf16.mxu0 0
        %1404 = vmatpush1.bf16.msra.mxu0 0
        %1405 = vmatprep.subr.bf16.mxu0 0
        %1406 = vmatpush1.bf16.msra.mxu0 0
        %1407 = vmatprep.subr.bf16.mxu0 0
        %1408 = vmatpush1.bf16.msra.mxu0 0
        %1409 = vmatprep.mubr.bf16.mxu0 0
        %1410 = vmatmul.mubr.bf16.gmra.mrb[0].mxu0 %v1375
        %v1411 = vpop.f32.mrb[0].mxu0
        %v1412 = vadd.f32 %v1372, %v1411
        %v1413 = vpop.f32.mrb[0].mxu0
        %v1414 = vpop.f32.mrb[0].mxu0
        %v1415 = vadd.f32 %v1372, %v1414
        %v1416 = vpop.f32.mrb[0].mxu0
        %1417 = vdwg.mxu0
        %v1418 = vmax.f32 %v1412, 0.0
        %v1419 = vmax.f32 %v1415, 0.0
        %v1420 = vld [vmem:[%s329] sm:$0x1]
        %v1422 = vlaneseq
        %v1423 = vshrl.u32 %v1422, 7
        %v1424 = vsub.s32 0, %v1423
        %v1425 = vrot.slane %v1420, %v1424
        %v1427 = vmul.f32 %v1418, %v1425
        %v1428 = vmul.f32 %v1419, %v1425
        %vm1429 = vcmask 261120
        %v1430 = vsel %vm1429, %v1427, 0.0
        %1431 = vadd.xlane.f32.xlu0 %v1430
        %v1432 = vpop.xlane.xlu0 %1431
        %v1433 = vsel %vm1429, %v1428, 0.0
        %1434 = vadd.xlane.f32.xlu0 %v1433
        %v1435 = vpop.xlane.xlu0 %1434
        %v1436 = vadd.f32 %v1432, %v1245
        %v1437 = vadd.f32 %v1435, %v1245
        %v1438 = vmax.f32 %v1436, 0.0
        %v1439 = vmax.f32 %v1437, 0.0
        %vm1440 = vcmask 794368
        %v1441 = vsel %vm1440, %v1438, 0.0
        %v1442 = vrot.slane %v1441, 4
        %v1443 = vadd.f32 %v1441, %v1442
        %v1444 = vrot.slane %v1443, 2
        %v1445 = vadd.f32 %v1443, %v1444
        %v1446 = vrot.slane %v1445, 1
        %v1447 = vadd.f32 %v1445, %v1446
        %v1448 = vsel %vm1440, %v1439, 0.0
        %v1449 = vrot.slane %v1448, 4
        %v1450 = vadd.f32 %v1448, %v1449
        %v1451 = vrot.slane %v1450, 2
        %v1452 = vadd.f32 %v1450, %v1451
        %v1453 = vrot.slane %v1452, 1
        %v1454 = vadd.f32 %v1452, %v1453
        %1456 = vrot.lane.b32.xlu0 %v1447, 32
        %v1457 = vpop.permute.xlu0 %1456
        %1460 = vrot.lane.b32.xlu0 %v1454, 33
        %v1461 = vpop.permute.xlu0 %1460
        %vm1463 = vcmask 7168
        %v1464 = vsel %vm1463, %v1457, %v1461
        %vm1465 = vcmask 8192
        %1466 = vst.msk [vmem:[%s332] sm:$0x1] %vm1465, %v1464
        %p1467 = scmp.lt.s32.totalorder %s20, 3
        %s1468 = scalar_select %p1467, %s20, 3
        %s1469 = scalar_lea.vmem %s8, %s1468
        // Predicated region
        $region57: #{dropout_net_forward_batched.1} parent=51 // pred_check
          %p1470 = pneg %p216
        $region58: #{dropout_net_forward_batched.1} parent=51 // pred_check_branch
          %1472 = sbr.rel (%p1470) target = $region60
        $region59: #{dropout_net_forward_batched.1} parent=51 // pred_region
          _
        $region60: #{dropout_net_forward_batched.1} parent=51 // pred_fallthru
          _
      $region52: #{dropout_net_forward_batched.1} parent=5 // pred_fallthru
        _
      %p1473 = scmp.le.s32.totalorder 2, %s15
      // Predicated region
      $region61: #{dropout_net_forward_batched.1} parent=5 // pred_check
        %p1474 = pneg %p1473
      $region62: #{dropout_net_forward_batched.1} parent=5 // pred_check_branch
        %1476 = sbr.rel (%p1474) target = $region64
      $region63: #{dropout_net_forward_batched.1} parent=5 // pred_region
        %s1477 = ssub.s32 %s15, 2
        // Predicated region
        $region65: #{dropout_net_forward_batched.1} parent=63 // pred_check
          %p1478 = pneg %p222
        $region66: #{dropout_net_forward_batched.1} parent=63 // pred_check_branch
          %1480 = sbr.rel (%p1478) target = $region68
        $region67: #{dropout_net_forward_batched.1} parent=63 // pred_region
          %p1481 = scmp.lt.s32.totalorder %s21, 3
          %s1482 = scalar_select %p1481, %s21, 3
          %s1483 = scalar_lea.vmem %s8, %s1482
        $region68: #{dropout_net_forward_batched.1} parent=63 // pred_fallthru
          _
      $region64: #{dropout_net_forward_batched.1} parent=5 // pred_fallthru
        _
    $region6: #{dropout_net_forward_batched.1} parent=1 // loop_footer
      %s19 = sadd.s32 1, %s15
    $region7: #{dropout_net_forward_batched.1} parent=1 // loop_footer_branch
      %14 = sbr.rel target = $region3
    $region8: #{dropout_net_forward_batched.1} parent=1 // loop_exit
      _
    %1484 = vsyncpa [#allocation3], 1
    %s1485 = scalar_lea.sflag [#allocation3], 1
    %1486 = vsyncpa %s1485, 1

</llo_original>
